<compile_context>
chip_gen: v5e
topology: v5e:2x2
jax: 0.10.0
libtpu: 0.0.40
codegen_flags: <defaults>
</compile_context>

<pallas_src>
import jax
import jax.numpy as jnp
import numpy as np
from jax.experimental import pallas as pl
from jax.experimental.pallas import tpu as pltpu

# ---- static configuration (small test shapes consistent with the module) ----
N, CIN, H, W = 2, 4, 16, 16          # PyTorch input x: (N, CIN, H, W)
COUT = 8                              # out_channels (256 in the default module)
RATES = (6, 12, 18, 24)               # default atrous rates
NB = len(RATES) + 2                   # number of concatenated branches
NB5 = len(RATES) + 1                  # branches whose matmul LHS is x itself
RATES_TB = tuple(r for r in RATES if r < H)   # rates whose top/bot rows matter
PAD_H = max(RATES_TB)                 # row padding actually needed (= 12)
HP = H + 2 * PAD_H                    # padded height (= 40)
NTB = 2 * len(RATES_TB)               # number of top/bottom banded weights
EPS = 1e-5


# ----------------------------- Pallas kernel ---------------------------------
def aspp_kernel(x_ref,                 # (H, W*CIN)               bf16 image
                wf_ref,                # (W*CIN, NB5*W*COUT)      bf16 fused wts
                bf_ref,                # (1, NB5*W*COUT)          f32 biases
                rtb_ref,               # (NTB, W*CIN, W*COUT)     bf16 top/bot
                wg_ref,                # (W*CIN, W*COUT)          bf16 global
                bg_ref,                # (1, W*COUT)              f32
                wp5_ref,               # (W*COUT, W*COUT)         bf16 glob proj
                wpc_ref,               # (NB5*W*COUT, W*COUT)     bf16 proj
                bp_ref,                # (1, W*COUT)              f32
                o_ref,                 # (H, W*COUT)              f32 output
                xpad_ref):             # VMEM scratch (HP, W*CIN) bf16
    x = x_ref[...]                                           # (16, 64) bf16

    # Row-padded copy: zero only the 12+12 pad rows, overwrite the interior.
    xpad_ref[0:PAD_H, :] = jnp.zeros((PAD_H, W * CIN), jnp.bfloat16)
    xpad_ref[PAD_H + H:HP, :] = jnp.zeros((HP - PAD_H - H, W * CIN), jnp.bfloat16)
    xpad_ref[PAD_H:PAD_H + H, :] = x

    # One fused matmul: 1x1 branch + center (ky=1) rows of every atrous branch.
    fc = jnp.dot(x, wf_ref[...], preferred_element_type=jnp.float32)
    fc = fc + bf_ref[...]                                    # (16, 640)

    # Branch features (each exactly one (16,128) bf16 vreg after the cast).
    feats = [jnp.maximum(fc[:, 0:W * COUT], 0.0).astype(jnp.bfloat16)]
    tb = 0
    for b, rate in enumerate(RATES):
        a = fc[:, (b + 1) * W * COUT:(b + 2) * W * COUT]     # 128-lane slice
        if rate < H:   # top/bottom kernel rows touch real image rows
            top = xpad_ref[PAD_H - rate:PAD_H - rate + H, :]
            bot = xpad_ref[PAD_H + rate:PAD_H + rate + H, :]
            a = a + jnp.dot(top, rtb_ref[2 * tb],
                            preferred_element_type=jnp.float32)
            a = a + jnp.dot(bot, rtb_ref[2 * tb + 1],
                            preferred_element_type=jnp.float32)
            tb += 1
        feats.append(jnp.maximum(a, 0.0).astype(jnp.bfloat16))

    # Fused projection over branches 0..4 (block-diagonal, K=640, N=128).
    fcat = jnp.concatenate(feats, axis=-1)                   # (16, 640) bf16
    proj = jnp.dot(fcat, wpc_ref[...], preferred_element_type=jnp.float32)

    # Global-average-pool branch: lane-dense (N=128) dots.  Bilinear upsampling
    # of a 1x1 map (align_corners=False) is a constant broadcast over rows.
    colsum = jnp.sum(x.astype(jnp.float32), axis=0, keepdims=True)   # (1, 64)
    gp = jnp.dot(colsum.astype(jnp.bfloat16), wg_ref[...],
                 preferred_element_type=jnp.float32)
    g = jnp.maximum(gp + bg_ref[...], 0.0)                   # (1, 128)
    v = jnp.dot(g.astype(jnp.bfloat16), wp5_ref[...],
                preferred_element_type=jnp.float32)          # (1, 128)

    # Projection BN shift + ReLU; Dropout(0.5) is identity in eval mode.
    o_ref[...] = jnp.maximum(proj + v + bp_ref[...], 0.0)    # (16, 128) f32


# ----------------------- host-side weight restructuring -----------------------
def pack_params(params):
    """Fold the ASPP weights into lane-dense banded / block-diagonal matrices."""
    w1, b1, was, bas, wg, bg, wp, bp = params
    f32, bf16 = jnp.float32, jnp.bfloat16
    eye_w = jnp.eye(W, dtype=f32)

    def band(w_row, rate):
        # w_row: (3, CIN, COUT) taps of one kernel row -> (W*CIN, W*COUT).
        # Truncated eye encodes the kx shift AND the W-direction zero padding.
        r = jnp.zeros((W * CIN, W * COUT), f32)
        for kx in range(3):
            shift = jnp.eye(W, W, k=-(kx - 1) * rate, dtype=f32)
            r = r + jnp.kron(shift, w_row[kx])
        return r

    # Fused weight: 1x1 branch + every atrous center row, concatenated on N.
    wf_cols = [jnp.kron(eye_w, w1)]
    bf_cols = [jnp.tile(b1, (1, W))]
    for w, b, rate in zip(was, bas, RATES):
        wf_cols.append(band(w[1], rate))
        bf_cols.append(jnp.tile(b, (1, W)))
    wf = jnp.concatenate(wf_cols, axis=1).astype(bf16)        # (64, 640)
    bfu = jnp.concatenate(bf_cols, axis=1).astype(f32)        # (1, 640)

    # Top/bottom kernel rows, only for rates whose bands reach real rows.
    rtb_list = []
    for w, rate in zip(was, RATES):
        if rate < H:
            rtb_list.append(band(w[0], rate))
            rtb_list.append(band(w[2], rate))
    rtb = jnp.stack(rtb_list).astype(bf16)                    # (4, 64, 128)

    # Global-pool branch: mean folded in, pre-tiled lane-dense.
    wg_wide = (jnp.tile(wg, (W, W)) / float(H * W)).astype(bf16)   # (64, 128)
    bg_wide = jnp.tile(bg, (1, W)).astype(f32)                     # (1, 128)

    # Projection: branches 0..4 stacked block-diagonal, global branch separate.
    wp_blocks = [wp[b * COUT:(b + 1) * COUT, :] for b in range(NB)]
    wpc = jnp.concatenate([jnp.kron(eye_w, wb) for wb in wp_blocks[:NB5]],
                          axis=0).astype(bf16)                # (640, 128)
    wp5 = jnp.kron(eye_w, wp_blocks[NB5]).astype(bf16)        # (128, 128)
    bp_row = jnp.tile(bp, (1, W)).astype(f32)                 # (1, 128)

    return wf, bfu, rtb, wg_wide, bg_wide, wp5, wpc, bp_row


# ------------------------------ wrapper ---------------------------------------
def aspp_pallas(x_nhwc, params):
    packed = pack_params(params)
    x2 = x_nhwc.reshape(N, H, W * CIN).astype(jnp.bfloat16)   # lane-dense bf16

    # Grid-invariant weights: whole-array blocks with constant index maps.
    # TODO(synk): mark these pipeline_mode=pl.Buffered(1) (and tile the lane
    # axis + set vmem_limit_bytes) for production-sized COUT.
    def full(shape):
        nd = len(shape)
        return pl.BlockSpec(shape, lambda n, _nd=nd: (0,) * _nd)

    in_specs = [pl.BlockSpec((None, H, W * CIN), lambda n: (n, 0, 0))]
    in_specs += [full(p.shape) for p in packed]

    out = pl.pallas_call(
        aspp_kernel,
        out_shape=jax.ShapeDtypeStruct((N, H, W * COUT), jnp.float32),
        grid_spec=pltpu.PrefetchScalarGridSpec(
            num_scalar_prefetch=0,
            grid=(N,),
            in_specs=in_specs,
            out_specs=pl.BlockSpec((None, H, W * COUT), lambda n: (n, 0, 0)),
            scratch_shapes=[pltpu.VMEM((HP, W * CIN), jnp.bfloat16)]),
        compiler_params=pltpu.CompilerParams(
            dimension_semantics=("parallel",)),
    )(x2, *packed)
    return out.reshape(N, H, W, COUT)


# --------------------- deterministic parameter construction ------------------
def make_params(key):
    keys = iter(jax.random.split(key, 40))

    def bn_fold(cout):
        gamma = 1.0 + 0.1 * jax.random.normal(next(keys), (cout,))
        beta = 0.1 * jax.random.normal(next(keys), (cout,))
        mean = 0.1 * jax.random.normal(next(keys), (cout,))
        var = jnp.abs(jax.random.normal(next(keys), (cout,))) + 0.5
        scale = gamma / jnp.sqrt(var + EPS)
        shift = beta - mean * scale
        return scale.astype(jnp.float32), shift.reshape(1, cout).astype(jnp.float32)

    def folded_1x1(cin, cout):
        w = 0.1 * jax.random.normal(next(keys), (cin, cout), jnp.float32)
        scale, shift = bn_fold(cout)
        return w * scale[None, :], shift

    def folded_3x3(cin, cout):
        w = 0.1 * jax.random.normal(next(keys), (3, 3, cin, cout), jnp.float32)
        scale, shift = bn_fold(cout)
        return w * scale[None, None, None, :], shift

    w1, b1 = folded_1x1(CIN, COUT)
    was, bas = [], []
    for _ in RATES:
        w, b = folded_3x3(CIN, COUT)
        was.append(w)
        bas.append(b)
    wg, bg = folded_1x1(CIN, COUT)
    wp, bp = folded_1x1(NB * COUT, COUT)
    return w1, b1, was, bas, wg, bg, wp, bp


# ------------------------ pure-JAX reference (for checking) ------------------
def aspp_ref(x_nhwc, params):
    w1, b1, was, bas, wg, bg, wp, bp = params
    relu = lambda y: jnp.maximum(y, 0.0)
    feats = [relu(jnp.einsum('nhwc,cd->nhwd', x_nhwc, w1) + b1.reshape(1, 1, 1, -1))]
    for w, b, r in zip(was, bas, RATES):
        y = jax.lax.conv_general_dilated(
            x_nhwc, w, window_strides=(1, 1), padding=[(r, r), (r, r)],
            rhs_dilation=(r, r), dimension_numbers=('NHWC', 'HWIO', 'NHWC'))
        feats.append(relu(y + b.reshape(1, 1, 1, -1)))
    gm = jnp.mean(x_nhwc, axis=(1, 2))                        # (N, CIN)
    g = relu(gm @ wg + bg)                                    # (N, COUT)
    feats.append(jnp.broadcast_to(g[:, None, None, :], (N, H, W, COUT)))
    cat = jnp.concatenate(feats, axis=-1)
    out = relu(jnp.einsum('nhwc,cd->nhwd', cat, wp) + bp.reshape(1, 1, 1, -1))
    return out


# ---------------------------------- main --------------------------------------
if __name__ == "__main__":
    key = jax.random.PRNGKey(0)
    kx, kp = jax.random.split(key)

    # PyTorch-style NCHW input, transposed to NHWC for the kernel.
    x_nchw = jax.random.normal(kx, (N, CIN, H, W), jnp.float32)
    x_nhwc = jnp.transpose(x_nchw, (0, 2, 3, 1))

    params = make_params(kp)

    out = aspp_pallas(x_nhwc, params)
    out = jax.block_until_ready(out)

    ref = jax.block_until_ready(aspp_ref(x_nhwc, params))
    # bf16 weights/activations: loosened tolerance per the perf review.
    np.testing.assert_allclose(np.asarray(out), np.asarray(ref),
                               rtol=2e-2, atol=2e-2)

    print("KERNEL_OK")
</pallas_src>

<mosaic_0001>
module attributes {stable_mosaic.version = 11 : i64} {
  func.func @aspp_kernel(%arg0: i32, %arg1: memref<1x16x64xbf16, #tpu.memory_space<vmem>>, %arg2: memref<64x640xbf16, #tpu.memory_space<vmem>>, %arg3: memref<1x640xf32, #tpu.memory_space<vmem>>, %arg4: memref<4x64x128xbf16, #tpu.memory_space<vmem>>, %arg5: memref<64x128xbf16, #tpu.memory_space<vmem>>, %arg6: memref<1x128xf32, #tpu.memory_space<vmem>>, %arg7: memref<128x128xbf16, #tpu.memory_space<vmem>>, %arg8: memref<640x128xbf16, #tpu.memory_space<vmem>>, %arg9: memref<1x128xf32, #tpu.memory_space<vmem>>, %arg10: memref<1x16x128xf32, #tpu.memory_space<vmem>>, %arg11: memref<40x64xbf16, #tpu.memory_space<vmem>>) attributes {dimension_semantics = [#tpu.dimension_semantics<parallel>], iteration_bounds = array<i64: 2>, scalar_prefetch = 0 : i64, scratch_operands = 1 : i64, tpu.core_type = #tpu.core_type<tc>, window_params = [{transform_indices = @transform_0, window_bounds = array<i64: 1, 16, 64>}, {pipeline_mode = #tpu.pipeline_mode<synchronous>, transform_indices = @transform_1, window_bounds = array<i64: 64, 640>}, {pipeline_mode = #tpu.pipeline_mode<synchronous>, transform_indices = @transform_2, window_bounds = array<i64: 1, 640>}, {pipeline_mode = #tpu.pipeline_mode<synchronous>, transform_indices = @transform_3, window_bounds = array<i64: 4, 64, 128>}, {pipeline_mode = #tpu.pipeline_mode<synchronous>, transform_indices = @transform_4, window_bounds = array<i64: 64, 128>}, {pipeline_mode = #tpu.pipeline_mode<synchronous>, transform_indices = @transform_5, window_bounds = array<i64: 1, 128>}, {pipeline_mode = #tpu.pipeline_mode<synchronous>, transform_indices = @transform_6, window_bounds = array<i64: 128, 128>}, {pipeline_mode = #tpu.pipeline_mode<synchronous>, transform_indices = @transform_7, window_bounds = array<i64: 640, 128>}, {pipeline_mode = #tpu.pipeline_mode<synchronous>, transform_indices = @transform_8, window_bounds = array<i64: 1, 128>}, {transform_indices = @transform_9, window_bounds = array<i64: 1, 16, 128>}]} {
    %c0 = arith.constant 0 : index
    %c0_0 = arith.constant 0 : index
    %c0_1 = arith.constant 0 : index
    %0 = vector.load %arg1[%c0, %c0_0, %c0_1] : memref<1x16x64xbf16, #tpu.memory_space<vmem>>, vector<1x16x64xbf16>
    %1 = vector.shape_cast %0 : vector<1x16x64xbf16> to vector<16x64xbf16>
    %cst = arith.constant 0.000000e+00 : bf16
    %2 = vector.broadcast %cst : bf16 to vector<12x64xbf16>
    %c0_2 = arith.constant 0 : index
    %c0_3 = arith.constant 0 : index
    %3 = vector.load %arg11[%c0_2, %c0_3] : memref<40x64xbf16, #tpu.memory_space<vmem>>, vector<12x64xbf16>
    tpu.vector_store %arg11[%c0_2, %c0_3], %2 {strides = array<i32>} : memref<40x64xbf16, #tpu.memory_space<vmem>>, vector<12x64xbf16>,
    %cst_4 = arith.constant 0.000000e+00 : bf16
    %4 = vector.broadcast %cst_4 : bf16 to vector<12x64xbf16>
    %c28 = arith.constant 28 : index
    %c0_5 = arith.constant 0 : index
    %5 = vector.load %arg11[%c28, %c0_5] : memref<40x64xbf16, #tpu.memory_space<vmem>>, vector<12x64xbf16>
    tpu.vector_store %arg11[%c28, %c0_5], %4 {strides = array<i32>} : memref<40x64xbf16, #tpu.memory_space<vmem>>, vector<12x64xbf16>,
    %c12 = arith.constant 12 : index
    %c0_6 = arith.constant 0 : index
    %6 = vector.load %arg11[%c12, %c0_6] : memref<40x64xbf16, #tpu.memory_space<vmem>>, vector<16x64xbf16>
    tpu.vector_store %arg11[%c12, %c0_6], %1 {strides = array<i32>} : memref<40x64xbf16, #tpu.memory_space<vmem>>, vector<16x64xbf16>,
    %c0_7 = arith.constant 0 : index
    %c0_8 = arith.constant 0 : index
    %7 = vector.load %arg2[%c0_7, %c0_8] : memref<64x640xbf16, #tpu.memory_space<vmem>>, vector<64x640xbf16>
    %cst_9 = arith.constant dense<0.000000e+00> : vector<16x640xf32>
    %8 = tpu.matmul %1, %7, %cst_9 {dimension_numbers = #tpu.dot_dimension_numbers<[1], [0], [0], [1], [0, 0, 1, 1], [], []>} : vector<16x64xbf16>, vector<64x640xbf16>, vector<16x640xf32> -> vector<16x640xf32>
    %c0_10 = arith.constant 0 : index
    %c0_11 = arith.constant 0 : index
    %9 = vector.load %arg3[%c0_10, %c0_11] : memref<1x640xf32, #tpu.memory_space<vmem>>, vector<1x640xf32>
    %10 = vector.broadcast %9 : vector<1x640xf32> to vector<16x640xf32>
    %11 = arith.addf %8, %10 : vector<16x640xf32>
    %12 = vector.extract_strided_slice %11 {offsets = [0, 0], sizes = [16, 128], strides = [1, 1]} : vector<16x640xf32> to vector<16x128xf32>
    %cst_12 = arith.constant 0.000000e+00 : f32
    %13 = vector.broadcast %cst_12 : f32 to vector<16x128xf32>
    %14 = arith.maximumf %12, %13 : vector<16x128xf32>
    %15 = arith.truncf %14 : vector<16x128xf32> to vector<16x128xbf16>
    %16 = vector.extract_strided_slice %11 {offsets = [0, 128], sizes = [16, 128], strides = [1, 1]} : vector<16x640xf32> to vector<16x128xf32>
    %c6 = arith.constant 6 : index
    %c0_13 = arith.constant 0 : index
    %17 = vector.load %arg11[%c6, %c0_13] : memref<40x64xbf16, #tpu.memory_space<vmem>>, vector<16x64xbf16>
    %c18 = arith.constant 18 : index
    %c0_14 = arith.constant 0 : index
    %18 = vector.load %arg11[%c18, %c0_14] : memref<40x64xbf16, #tpu.memory_space<vmem>>, vector<16x64xbf16>
    %c0_15 = arith.constant 0 : index
    %c0_16 = arith.constant 0 : index
    %c0_17 = arith.constant 0 : index
    %19 = vector.load %arg4[%c0_15, %c0_16, %c0_17] : memref<4x64x128xbf16, #tpu.memory_space<vmem>>, vector<1x64x128xbf16>
    %20 = vector.shape_cast %19 : vector<1x64x128xbf16> to vector<64x128xbf16>
    %cst_18 = arith.constant dense<0.000000e+00> : vector<16x128xf32>
    %21 = tpu.matmul %17, %20, %cst_18 {dimension_numbers = #tpu.dot_dimension_numbers<[1], [0], [0], [1], [0, 0, 1, 1], [], []>} : vector<16x64xbf16>, vector<64x128xbf16>, vector<16x128xf32> -> vector<16x128xf32>
    %22 = arith.addf %16, %21 : vector<16x128xf32>
    %c1 = arith.constant 1 : index
    %c0_19 = arith.constant 0 : index
    %c0_20 = arith.constant 0 : index
    %23 = vector.load %arg4[%c1, %c0_19, %c0_20] : memref<4x64x128xbf16, #tpu.memory_space<vmem>>, vector<1x64x128xbf16>
    %24 = vector.shape_cast %23 : vector<1x64x128xbf16> to vector<64x128xbf16>
    %cst_21 = arith.constant dense<0.000000e+00> : vector<16x128xf32>
    %25 = tpu.matmul %18, %24, %cst_21 {dimension_numbers = #tpu.dot_dimension_numbers<[1], [0], [0], [1], [0, 0, 1, 1], [], []>} : vector<16x64xbf16>, vector<64x128xbf16>, vector<16x128xf32> -> vector<16x128xf32>
    %26 = arith.addf %22, %25 : vector<16x128xf32>
    %cst_22 = arith.constant 0.000000e+00 : f32
    %27 = vector.broadcast %cst_22 : f32 to vector<16x128xf32>
    %28 = arith.maximumf %26, %27 : vector<16x128xf32>
    %29 = arith.truncf %28 : vector<16x128xf32> to vector<16x128xbf16>
    %30 = vector.extract_strided_slice %11 {offsets = [0, 256], sizes = [16, 128], strides = [1, 1]} : vector<16x640xf32> to vector<16x128xf32>
    %c0_23 = arith.constant 0 : index
    %c0_24 = arith.constant 0 : index
    %31 = vector.load %arg11[%c0_23, %c0_24] : memref<40x64xbf16, #tpu.memory_space<vmem>>, vector<16x64xbf16>
    %c24 = arith.constant 24 : index
    %c0_25 = arith.constant 0 : index
    %32 = vector.load %arg11[%c24, %c0_25] : memref<40x64xbf16, #tpu.memory_space<vmem>>, vector<16x64xbf16>
    %c2 = arith.constant 2 : index
    %c0_26 = arith.constant 0 : index
    %c0_27 = arith.constant 0 : index
    %33 = vector.load %arg4[%c2, %c0_26, %c0_27] : memref<4x64x128xbf16, #tpu.memory_space<vmem>>, vector<1x64x128xbf16>
    %34 = vector.shape_cast %33 : vector<1x64x128xbf16> to vector<64x128xbf16>
    %cst_28 = arith.constant dense<0.000000e+00> : vector<16x128xf32>
    %35 = tpu.matmul %31, %34, %cst_28 {dimension_numbers = #tpu.dot_dimension_numbers<[1], [0], [0], [1], [0, 0, 1, 1], [], []>} : vector<16x64xbf16>, vector<64x128xbf16>, vector<16x128xf32> -> vector<16x128xf32>
    %36 = arith.addf %30, %35 : vector<16x128xf32>
    %c3 = arith.constant 3 : index
    %c0_29 = arith.constant 0 : index
    %c0_30 = arith.constant 0 : index
    %37 = vector.load %arg4[%c3, %c0_29, %c0_30] : memref<4x64x128xbf16, #tpu.memory_space<vmem>>, vector<1x64x128xbf16>
    %38 = vector.shape_cast %37 : vector<1x64x128xbf16> to vector<64x128xbf16>
    %cst_31 = arith.constant dense<0.000000e+00> : vector<16x128xf32>
    %39 = tpu.matmul %32, %38, %cst_31 {dimension_numbers = #tpu.dot_dimension_numbers<[1], [0], [0], [1], [0, 0, 1, 1], [], []>} : vector<16x64xbf16>, vector<64x128xbf16>, vector<16x128xf32> -> vector<16x128xf32>
    %40 = arith.addf %36, %39 : vector<16x128xf32>
    %cst_32 = arith.constant 0.000000e+00 : f32
    %41 = vector.broadcast %cst_32 : f32 to vector<16x128xf32>
    %42 = arith.maximumf %40, %41 : vector<16x128xf32>
    %43 = arith.truncf %42 : vector<16x128xf32> to vector<16x128xbf16>
    %44 = vector.extract_strided_slice %11 {offsets = [0, 384], sizes = [16, 128], strides = [1, 1]} : vector<16x640xf32> to vector<16x128xf32>
    %cst_33 = arith.constant 0.000000e+00 : f32
    %45 = vector.broadcast %cst_33 : f32 to vector<16x128xf32>
    %46 = arith.maximumf %44, %45 : vector<16x128xf32>
    %47 = arith.truncf %46 : vector<16x128xf32> to vector<16x128xbf16>
    %48 = vector.extract_strided_slice %11 {offsets = [0, 512], sizes = [16, 128], strides = [1, 1]} : vector<16x640xf32> to vector<16x128xf32>
    %cst_34 = arith.constant 0.000000e+00 : f32
    %49 = vector.broadcast %cst_34 : f32 to vector<16x128xf32>
    %50 = arith.maximumf %48, %49 : vector<16x128xf32>
    %51 = arith.truncf %50 : vector<16x128xf32> to vector<16x128xbf16>
    %52 = tpu.concatenate %15, %29, %43, %47, %51 in 1 : vector<16x128xbf16>, vector<16x128xbf16>, vector<16x128xbf16>, vector<16x128xbf16>, vector<16x128xbf16> -> vector<16x640xbf16>
    %c0_35 = arith.constant 0 : index
    %c0_36 = arith.constant 0 : index
    %53 = vector.load %arg8[%c0_35, %c0_36] : memref<640x128xbf16, #tpu.memory_space<vmem>>, vector<640x128xbf16>
    %cst_37 = arith.constant dense<0.000000e+00> : vector<16x128xf32>
    %54 = tpu.matmul %52, %53, %cst_37 {dimension_numbers = #tpu.dot_dimension_numbers<[1], [0], [0], [1], [0, 0, 1, 1], [], []>} : vector<16x640xbf16>, vector<640x128xbf16>, vector<16x128xf32> -> vector<16x128xf32>
    %55 = arith.extf %1 : vector<16x64xbf16> to vector<16x64xf32>
    %cst_38 = arith.constant dense<0.000000e+00> : vector<64xf32>
    %56 = vector.multi_reduction <add>, %55, %cst_38 [0] : vector<16x64xf32> to vector<64xf32>
    %57 = vector.shape_cast %56 : vector<64xf32> to vector<1x64xf32>
    %58 = arith.truncf %57 : vector<1x64xf32> to vector<1x64xbf16>
    %c0_39 = arith.constant 0 : index
    %c0_40 = arith.constant 0 : index
    %59 = vector.load %arg5[%c0_39, %c0_40] : memref<64x128xbf16, #tpu.memory_space<vmem>>, vector<64x128xbf16>
    %cst_41 = arith.constant dense<0.000000e+00> : vector<1x128xf32>
    %60 = tpu.matmul %58, %59, %cst_41 {dimension_numbers = #tpu.dot_dimension_numbers<[1], [0], [0], [1], [0, 0, 1, 1], [], []>} : vector<1x64xbf16>, vector<64x128xbf16>, vector<1x128xf32> -> vector<1x128xf32>
    %c0_42 = arith.constant 0 : index
    %c0_43 = arith.constant 0 : index
    %61 = vector.load %arg6[%c0_42, %c0_43] : memref<1x128xf32, #tpu.memory_space<vmem>>, vector<1x128xf32>
    %62 = arith.addf %60, %61 : vector<1x128xf32>
    %cst_44 = arith.constant 0.000000e+00 : f32
    %63 = vector.broadcast %cst_44 : f32 to vector<1x128xf32>
    %64 = arith.maximumf %62, %63 : vector<1x128xf32>
    %65 = arith.truncf %64 : vector<1x128xf32> to vector<1x128xbf16>
    %c0_45 = arith.constant 0 : index
    %c0_46 = arith.constant 0 : index
    %66 = vector.load %arg7[%c0_45, %c0_46] : memref<128x128xbf16, #tpu.memory_space<vmem>>, vector<128x128xbf16>
    %cst_47 = arith.constant dense<0.000000e+00> : vector<1x128xf32>
    %67 = tpu.matmul %65, %66, %cst_47 {dimension_numbers = #tpu.dot_dimension_numbers<[1], [0], [0], [1], [0, 0, 1, 1], [], []>} : vector<1x128xbf16>, vector<128x128xbf16>, vector<1x128xf32> -> vector<1x128xf32>
    %68 = vector.broadcast %67 : vector<1x128xf32> to vector<16x128xf32>
    %69 = arith.addf %54, %68 : vector<16x128xf32>
    %c0_48 = arith.constant 0 : index
    %c0_49 = arith.constant 0 : index
    %70 = vector.load %arg9[%c0_48, %c0_49] : memref<1x128xf32, #tpu.memory_space<vmem>>, vector<1x128xf32>
    %71 = vector.broadcast %70 : vector<1x128xf32> to vector<16x128xf32>
    %72 = arith.addf %69, %71 : vector<16x128xf32>
    %cst_50 = arith.constant 0.000000e+00 : f32
    %73 = vector.broadcast %cst_50 : f32 to vector<16x128xf32>
    %74 = arith.maximumf %72, %73 : vector<16x128xf32>
    %c0_51 = arith.constant 0 : index
    %c0_52 = arith.constant 0 : index
    %c0_53 = arith.constant 0 : index
    %75 = vector.load %arg10[%c0_51, %c0_52, %c0_53] : memref<1x16x128xf32, #tpu.memory_space<vmem>>, vector<1x16x128xf32>
    %76 = vector.shape_cast %75 : vector<1x16x128xf32> to vector<16x128xf32>
    %77 = vector.shape_cast %74 : vector<16x128xf32> to vector<1x16x128xf32>
    tpu.vector_store %arg10[%c0_51, %c0_52, %c0_53], %77 {strides = array<i32>} : memref<1x16x128xf32, #tpu.memory_space<vmem>>, vector<1x16x128xf32>,
    return
  }
  func.func @transform_0(%arg0: i32) -> (i32, i32, i32) {
    %c0_i32 = arith.constant 0 : i32
    %c0_i32_0 = arith.constant 0 : i32
    %c0_i32_1 = arith.constant 0 : i32
    return %arg0, %c0_i32, %c0_i32_0 : i32, i32, i32
  }
  func.func @transform_1(%arg0: i32) -> (i32, i32) {
    %c0_i32 = arith.constant 0 : i32
    %c0_i32_0 = arith.constant 0 : i32
    %c0_i32_1 = arith.constant 0 : i32
    return %c0_i32, %c0_i32_0 : i32, i32
  }
  func.func @transform_2(%arg0: i32) -> (i32, i32) {
    %c0_i32 = arith.constant 0 : i32
    %c0_i32_0 = arith.constant 0 : i32
    %c0_i32_1 = arith.constant 0 : i32
    return %c0_i32, %c0_i32_0 : i32, i32
  }
  func.func @transform_3(%arg0: i32) -> (i32, i32, i32) {
    %c0_i32 = arith.constant 0 : i32
    %c0_i32_0 = arith.constant 0 : i32
    %c0_i32_1 = arith.constant 0 : i32
    %c0_i32_2 = arith.constant 0 : i32
    return %c0_i32, %c0_i32_0, %c0_i32_1 : i32, i32, i32
  }
  func.func @transform_4(%arg0: i32) -> (i32, i32) {
    %c0_i32 = arith.constant 0 : i32
    %c0_i32_0 = arith.constant 0 : i32
    %c0_i32_1 = arith.constant 0 : i32
    return %c0_i32, %c0_i32_0 : i32, i32
  }
  func.func @transform_5(%arg0: i32) -> (i32, i32) {
    %c0_i32 = arith.constant 0 : i32
    %c0_i32_0 = arith.constant 0 : i32
    %c0_i32_1 = arith.constant 0 : i32
    return %c0_i32, %c0_i32_0 : i32, i32
  }
  func.func @transform_6(%arg0: i32) -> (i32, i32) {
    %c0_i32 = arith.constant 0 : i32
    %c0_i32_0 = arith.constant 0 : i32
    %c0_i32_1 = arith.constant 0 : i32
    return %c0_i32, %c0_i32_0 : i32, i32
  }
  func.func @transform_7(%arg0: i32) -> (i32, i32) {
    %c0_i32 = arith.constant 0 : i32
    %c0_i32_0 = arith.constant 0 : i32
    %c0_i32_1 = arith.constant 0 : i32
    return %c0_i32, %c0_i32_0 : i32, i32
  }
  func.func @transform_8(%arg0: i32) -> (i32, i32) {
    %c0_i32 = arith.constant 0 : i32
    %c0_i32_0 = arith.constant 0 : i32
    %c0_i32_1 = arith.constant 0 : i32
    return %c0_i32, %c0_i32_0 : i32, i32
  }
  func.func @transform_9(%arg0: i32) -> (i32, i32, i32) {
    %c0_i32 = arith.constant 0 : i32
    %c0_i32_0 = arith.constant 0 : i32
    %c0_i32_1 = arith.constant 0 : i32
    return %arg0, %c0_i32, %c0_i32_0 : i32, i32, i32
  }
}

</mosaic_0001>

<llo_original>
// kernel: tpu_custom_call.1
$region0: #{tpu_custom_call.1}
  #allocation0 [shape = 'u32[]', space=smem, size = 0x4, offset = 0x4, fixed_abs, tag = 'smem constant byte address 0x4 - core index']
  #allocation1 [shape = 'u32[72,128]{1,0:T(1,128)}', space=vmem, size = 0x9000, scoped, tag = 'internal scratch']
  #allocation2 [shape = 'bf16[40,64]{1,0:T(8,128)(2,1)}', space=vmem, size = 0x2800, scoped, tag = 'scratch operand']
  %s0 = inlined_call_operand.hbm [shape: bf16[2,16,64], index: 0, kind: input, shape index: {}]
  %s1 = inlined_call_operand.hbm [shape: bf16[64,640], index: 1, kind: input, shape index: {}]
  %s2 = inlined_call_operand.hbm [shape: f32[1,640], index: 2, kind: input, shape index: {}]
  %s3 = inlined_call_operand.hbm [shape: bf16[4,64,128], index: 3, kind: input, shape index: {}]
  %s4 = inlined_call_operand.hbm [shape: bf16[64,128], index: 4, kind: input, shape index: {}]
  %s5 = inlined_call_operand.vmem [shape: f32[1,128], index: 5, kind: input, shape index: {}]
  %s6 = inlined_call_operand.hbm [shape: bf16[128,128], index: 6, kind: input, shape index: {}]
  %s7 = inlined_call_operand.hbm [shape: bf16[640,128], index: 7, kind: input, shape index: {}]
  %s8 = inlined_call_operand.vmem [shape: f32[1,128], index: 8, kind: input, shape index: {}]
  %s9 = inlined_call_operand.hbm [shape: f32[2,16,128], index: 9, kind: output, shape index: {}]
  %s10 = sld [smem:[#allocation0]]
  $region97: #{tpu_custom_call.1} parent=0
    _
  %s12 = ssub.s32 1, %s10
  %s13 = scalar_select 0, %s12, %s10
  $region1: #{tpu_custom_call.1} parent=0
    #allocation3 [shape = 'u8[8192]{0}', space=vmem, size = 0x2000, scoped, tag = 'input window, operand 0']
    #allocation4 [shape = 's32[2]{0}', space=sflag, size = 0x8, scoped, tag = 'scoped memory for tpu_custom_call.1']
    #allocation5 [shape = 's32[2]{0}', space=sflag, size = 0x8, scoped, tag = 'scoped memory for tpu_custom_call.1']
    #allocation6 [shape = 'u8[81920]{0}', space=vmem, size = 0x14000, scoped, tag = 'input window, operand 1, single buffered']
    #allocation7 [shape = 's32[1]{0}', space=sflag, size = 0x4, scoped, tag = 'scoped memory for tpu_custom_call.1']
    #allocation8 [shape = 'u8[2560]{0}', space=vmem, size = 0xc00, scoped, tag = 'input window, operand 2, single buffered']
    #allocation9 [shape = 'u8[65536]{0}', space=vmem, size = 0x10000, scoped, tag = 'input window, operand 3, single buffered']
    #allocation10 [shape = 's32[1]{0}', space=sflag, size = 0x4, scoped, tag = 'scoped memory for tpu_custom_call.1']
    #allocation11 [shape = 'u8[16384]{0}', space=vmem, size = 0x4000, scoped, tag = 'input window, operand 4, single buffered']
    #allocation12 [shape = 'u8[32768]{0}', space=vmem, size = 0x8000, scoped, tag = 'input window, operand 6, single buffered']
    #allocation13 [shape = 's32[1]{0}', space=sflag, size = 0x4, scoped, tag = 'scoped memory for tpu_custom_call.1']
    #allocation14 [shape = 'u8[163840]{0}', space=vmem, size = 0x28000, scoped, tag = 'input window, operand 7, single buffered']
    #allocation15 [shape = 'u8[16384]{0}', space=vmem, size = 0x4000, scoped, tag = 'output window, operand 0']
    %14 = vsyncpa [#allocation4], 0
    %s15 = scalar_lea.sflag [#allocation4], 1
    %16 = vsyncpa %s15, 0
    %17 = vsyncpa [#allocation7], 0
    %18 = vsyncpa [#allocation10], 0
    %19 = vsyncpa [#allocation13], 0
    %20 = vsyncpa [#allocation5], 0
    %s21 = scalar_lea.sflag [#allocation5], 1
    %22 = vsyncpa %s21, 0
    loop: start=0, step=1, limit=4
    $region2: #{tpu_custom_call.1} parent=1 // loop_pre_header
      _
    $region3: #{tpu_custom_call.1} parent=1 // loop_header
      %s24 = sphi 0, %s28
      %p25 = scmp.ge.s32.totalorder %s24, 4
      %s34 = sphi 0, %s36
      %s37 = sphi 0, %s34
      %s38 = sphi 0, %s37
      %s54 = sphi 0, %s38
      %s58 = sphi 0, %s58
      %s60 = sphi 0, %s58
      %s61 = sphi 0, %s60
      %s75 = sphi 0, %s61
      %s79 = sphi 0, %s79
      %s81 = sphi 0, %s79
      %s82 = sphi 0, %s81
      %s96 = sphi 0, %s82
      %s100 = sphi 0, %s100
      %s102 = sphi 0, %s100
      %s103 = sphi 0, %s102
      %s117 = sphi 0, %s103
      %s121 = sphi 0, %s121
      %s123 = sphi 0, %s121
      %s124 = sphi 0, %s123
      %s138 = sphi 0, %s124
      %s142 = sphi 0, %s142
      %s144 = sphi 0, %s142
      %s145 = sphi 0, %s144
      %s159 = sphi 0, %s145
      %s163 = sphi 0, %s163
      %s165 = sphi 0, %s163
      %s166 = sphi 0, %s165
      %s180 = sphi 0, %s166
      %s184 = sphi 0, %s184
      %s186 = sphi 0, %s184
      %s187 = sphi 0, %s186
      %s201 = sphi 0, %s187
      %s205 = sphi 0, %s205
      %s207 = sphi 0, %s205
      %s208 = sphi 0, %s207
      %s222 = sphi 0, %s208
      %s228 = sphi 0, %s230
      %s231 = sphi 0, %s228
      %s232 = sphi 0, %s231
      %s248 = sphi 0, %s232
    $region4: #{tpu_custom_call.1} parent=1 // loop_header_branch
      %27 = sbr.rel (%p25) target = $region8
    $region5: #{tpu_custom_call.1} parent=1 // loop_body
      %s29 = ssub.s32 %s24, 1
      %s30 = ssub.s32 %s24, 2
      %s31 = sadd.s32 %s24, 1
      %s32 = ssub.s32 %s24, %s31
      %p33 = scmp.eq.s32.totalorder %s32, 0
      %s35 = sadd.s32 %s34, 1
      %s36 = scalar_select %p33, %s34, %s35
      %p39 = pneg %p33
      %p40 = scmp.eq.s32.totalorder %s24, 1
      %p41 = por %p39, %p40
      %p42 = scmp.ne.s32.totalorder %s34, %s37
      %p43 = scmp.eq.s32.totalorder %s24, 0
      %p44 = por %p42, %p43
      %p45 = scmp.ne.s32.totalorder %s34, %s37
      %p46 = scmp.eq.s32.totalorder %s29, 1
      %p47 = por %p45, %p46
      %p48 = scmp.ne.s32.totalorder %s37, %s38
      %p49 = scmp.eq.s32.totalorder %s29, 0
      %p50 = por %p48, %p49
      %p51 = scmp.ne.s32.totalorder %s37, %s38
      %p52 = scmp.eq.s32.totalorder %s30, 1
      %p53 = por %p51, %p52
      %p55 = scmp.ne.s32.totalorder %s38, %s54
      %p56 = scmp.eq.s32.totalorder %s30, 0
      %p57 = por %p55, %p56
      %s59 = sadd.s32 %s58, 1
      %p62 = scmp.eq.s32.totalorder %s24, 1
      %p63 = scmp.ne.s32.totalorder %s58, %s60
      %p64 = scmp.eq.s32.totalorder %s24, 0
      %p65 = por %p63, %p64
      %p66 = scmp.ne.s32.totalorder %s58, %s60
      %p67 = scmp.eq.s32.totalorder %s29, 1
      %p68 = por %p66, %p67
      %p69 = scmp.ne.s32.totalorder %s60, %s61
      %p70 = scmp.eq.s32.totalorder %s29, 0
      %p71 = por %p69, %p70
      %p72 = scmp.ne.s32.totalorder %s60, %s61
      %p73 = scmp.eq.s32.totalorder %s30, 1
      %p74 = por %p72, %p73
      %p76 = scmp.ne.s32.totalorder %s61, %s75
      %p77 = scmp.eq.s32.totalorder %s30, 0
      %p78 = por %p76, %p77
      %s80 = sadd.s32 %s79, 1
      %p83 = scmp.eq.s32.totalorder %s24, 1
      %p84 = scmp.ne.s32.totalorder %s79, %s81
      %p85 = scmp.eq.s32.totalorder %s24, 0
      %p86 = por %p84, %p85
      %p87 = scmp.ne.s32.totalorder %s79, %s81
      %p88 = scmp.eq.s32.totalorder %s29, 1
      %p89 = por %p87, %p88
      %p90 = scmp.ne.s32.totalorder %s81, %s82
      %p91 = scmp.eq.s32.totalorder %s29, 0
      %p92 = por %p90, %p91
      %p93 = scmp.ne.s32.totalorder %s81, %s82
      %p94 = scmp.eq.s32.totalorder %s30, 1
      %p95 = por %p93, %p94
      %p97 = scmp.ne.s32.totalorder %s82, %s96
      %p98 = scmp.eq.s32.totalorder %s30, 0
      %p99 = por %p97, %p98
      %s101 = sadd.s32 %s100, 1
      %p104 = scmp.eq.s32.totalorder %s24, 1
      %p105 = scmp.ne.s32.totalorder %s100, %s102
      %p106 = scmp.eq.s32.totalorder %s24, 0
      %p107 = por %p105, %p106
      %p108 = scmp.ne.s32.totalorder %s100, %s102
      %p109 = scmp.eq.s32.totalorder %s29, 1
      %p110 = por %p108, %p109
      %p111 = scmp.ne.s32.totalorder %s102, %s103
      %p112 = scmp.eq.s32.totalorder %s29, 0
      %p113 = por %p111, %p112
      %p114 = scmp.ne.s32.totalorder %s102, %s103
      %p115 = scmp.eq.s32.totalorder %s30, 1
      %p116 = por %p114, %p115
      %p118 = scmp.ne.s32.totalorder %s103, %s117
      %p119 = scmp.eq.s32.totalorder %s30, 0
      %p120 = por %p118, %p119
      %s122 = sadd.s32 %s121, 1
      %p125 = scmp.eq.s32.totalorder %s24, 1
      %p126 = scmp.ne.s32.totalorder %s121, %s123
      %p127 = scmp.eq.s32.totalorder %s24, 0
      %p128 = por %p126, %p127
      %p129 = scmp.ne.s32.totalorder %s121, %s123
      %p130 = scmp.eq.s32.totalorder %s29, 1
      %p131 = por %p129, %p130
      %p132 = scmp.ne.s32.totalorder %s123, %s124
      %p133 = scmp.eq.s32.totalorder %s29, 0
      %p134 = por %p132, %p133
      %p135 = scmp.ne.s32.totalorder %s123, %s124
      %p136 = scmp.eq.s32.totalorder %s30, 1
      %p137 = por %p135, %p136
      %p139 = scmp.ne.s32.totalorder %s124, %s138
      %p140 = scmp.eq.s32.totalorder %s30, 0
      %p141 = por %p139, %p140
      %s143 = sadd.s32 %s142, 1
      %p146 = scmp.eq.s32.totalorder %s24, 1
      %p147 = scmp.ne.s32.totalorder %s142, %s144
      %p148 = scmp.eq.s32.totalorder %s24, 0
      %p149 = por %p147, %p148
      %p150 = scmp.ne.s32.totalorder %s142, %s144
      %p151 = scmp.eq.s32.totalorder %s29, 1
      %p152 = por %p150, %p151
      %p153 = scmp.ne.s32.totalorder %s144, %s145
      %p154 = scmp.eq.s32.totalorder %s29, 0
      %p155 = por %p153, %p154
      %p156 = scmp.ne.s32.totalorder %s144, %s145
      %p157 = scmp.eq.s32.totalorder %s30, 1
      %p158 = por %p156, %p157
      %p160 = scmp.ne.s32.totalorder %s145, %s159
      %p161 = scmp.eq.s32.totalorder %s30, 0
      %p162 = por %p160, %p161
      %s164 = sadd.s32 %s163, 1
      %p167 = scmp.eq.s32.totalorder %s24, 1
      %p168 = scmp.ne.s32.totalorder %s163, %s165
      %p169 = scmp.eq.s32.totalorder %s24, 0
      %p170 = por %p168, %p169
      %p171 = scmp.ne.s32.totalorder %s163, %s165
      %p172 = scmp.eq.s32.totalorder %s29, 1
      %p173 = por %p171, %p172
      %p174 = scmp.ne.s32.totalorder %s165, %s166
      %p175 = scmp.eq.s32.totalorder %s29, 0
      %p176 = por %p174, %p175
      %p177 = scmp.ne.s32.totalorder %s165, %s166
      %p178 = scmp.eq.s32.totalorder %s30, 1
      %p179 = por %p177, %p178
      %p181 = scmp.ne.s32.totalorder %s166, %s180
      %p182 = scmp.eq.s32.totalorder %s30, 0
      %p183 = por %p181, %p182
      %s185 = sadd.s32 %s184, 1
      %p188 = scmp.eq.s32.totalorder %s24, 1
      %p189 = scmp.ne.s32.totalorder %s184, %s186
      %p190 = scmp.eq.s32.totalorder %s24, 0
      %p191 = por %p189, %p190
      %p192 = scmp.ne.s32.totalorder %s184, %s186
      %p193 = scmp.eq.s32.totalorder %s29, 1
      %p194 = por %p192, %p193
      %p195 = scmp.ne.s32.totalorder %s186, %s187
      %p196 = scmp.eq.s32.totalorder %s29, 0
      %p197 = por %p195, %p196
      %p198 = scmp.ne.s32.totalorder %s186, %s187
      %p199 = scmp.eq.s32.totalorder %s30, 1
      %p200 = por %p198, %p199
      %p202 = scmp.ne.s32.totalorder %s187, %s201
      %p203 = scmp.eq.s32.totalorder %s30, 0
      %p204 = por %p202, %p203
      %s206 = sadd.s32 %s205, 1
      %p209 = scmp.eq.s32.totalorder %s24, 1
      %p210 = scmp.ne.s32.totalorder %s205, %s207
      %p211 = scmp.eq.s32.totalorder %s24, 0
      %p212 = por %p210, %p211
      %p213 = scmp.ne.s32.totalorder %s205, %s207
      %p214 = scmp.eq.s32.totalorder %s29, 1
      %p215 = por %p213, %p214
      %p216 = scmp.ne.s32.totalorder %s207, %s208
      %p217 = scmp.eq.s32.totalorder %s29, 0
      %p218 = por %p216, %p217
      %p219 = scmp.ne.s32.totalorder %s207, %s208
      %p220 = scmp.eq.s32.totalorder %s30, 1
      %p221 = por %p219, %p220
      %p223 = scmp.ne.s32.totalorder %s208, %s222
      %p224 = scmp.eq.s32.totalorder %s30, 0
      %p225 = por %p223, %p224
      %s226 = ssub.s32 %s24, %s31
      %p227 = scmp.eq.s32.totalorder %s226, 0
      %s229 = sadd.s32 %s228, 1
      %s230 = scalar_select %p227, %s228, %s229
      %p233 = pneg %p227
      %p234 = scmp.eq.s32.totalorder %s24, 1
      %p235 = por %p233, %p234
      %p236 = scmp.ne.s32.totalorder %s228, %s231
      %p237 = scmp.eq.s32.totalorder %s24, 0
      %p238 = por %p236, %p237
      %p239 = scmp.ne.s32.totalorder %s228, %s231
      %p240 = scmp.eq.s32.totalorder %s29, 1
      %p241 = por %p239, %p240
      %p242 = scmp.ne.s32.totalorder %s231, %s232
      %p243 = scmp.eq.s32.totalorder %s29, 0
      %p244 = por %p242, %p243
      %p245 = scmp.ne.s32.totalorder %s231, %s232
      %p246 = scmp.eq.s32.totalorder %s30, 1
      %p247 = por %p245, %p246
      %p249 = scmp.ne.s32.totalorder %s232, %s248
      %p250 = scmp.eq.s32.totalorder %s30, 0
      %p251 = por %p249, %p250
      %p252 = scmp.le.s32.totalorder 1, %s24
      %p253 = scmp.lt.s32.totalorder %s24, 3
      %p254 = pnand %p252, %p253
      %p255 = pneg %p254
      // Predicated region
      $region9: #{tpu_custom_call.1} parent=5 // pred_check
        _
      $region10: #{tpu_custom_call.1} parent=5 // pred_check_branch
        %257 = sbr.rel (%p254) target = $region12
      $region11: #{tpu_custom_call.1} parent=5 // pred_region
        %s258 = ssub.s32 %s24, 1
        // Predicated region
        $region13: #{tpu_custom_call.1} parent=11 // pred_check
          %p259 = pneg %p71
        $region14: #{tpu_custom_call.1} parent=11 // pred_check_branch
          %261 = sbr.rel (%p259) target = $region16
        $region15: #{tpu_custom_call.1} parent=11 // pred_region
          %263 = vsyncadd [#allocation7], 0
          %s264 = sshll.u32 %s1, 4
          %s265 = int_to_ptr.hbm [resolvable:$true] %s264
          %s266 = sshll.u32 [#allocation6], 4
          %s267 = int_to_ptr.vmem [resolvable:$true] %s266
          %272 = dma.hbm_to_vmem [thread:$0]  %s265, 2560, %s267, [#allocation7], 320, 320, 20
        $region16: #{tpu_custom_call.1} parent=11 // pred_fallthru
          _
        // Predicated region
        $region17: #{tpu_custom_call.1} parent=11 // pred_check
          %p273 = pneg %p92
        $region18: #{tpu_custom_call.1} parent=11 // pred_check_branch
          %275 = sbr.rel (%p273) target = $region20
        $region19: #{tpu_custom_call.1} parent=11 // pred_region
          %277 = vsyncadd [#allocation7], 0
          %s279 = sshll.u32 %s2, 4
          %s280 = int_to_ptr.hbm [resolvable:$true] %s279
          %s281 = sshll.u32 [#allocation8], 4
          %s282 = int_to_ptr.vmem [resolvable:$true] %s281
          %284 = dma.hbm_to_vmem [thread:$0]  %s280, 80, %s282, [#allocation7]
        $region20: #{tpu_custom_call.1} parent=11 // pred_fallthru
          _
        // Predicated region
        $region21: #{tpu_custom_call.1} parent=11 // pred_check
          %p285 = pneg %p113
        $region22: #{tpu_custom_call.1} parent=11 // pred_check_branch
          %287 = sbr.rel (%p285) target = $region24
        $region23: #{tpu_custom_call.1} parent=11 // pred_region
          %289 = vsyncadd [#allocation10], 0
          %s290 = sshll.u32 %s3, 4
          %s291 = int_to_ptr.hbm [resolvable:$true] %s290
          %s292 = sshll.u32 [#allocation9], 4
          %s293 = int_to_ptr.vmem [resolvable:$true] %s292
          %298 = dma.hbm_to_vmem [thread:$0]  %s291, 2048, %s293, [#allocation10], 64, 64, 4
        $region24: #{tpu_custom_call.1} parent=11 // pred_fallthru
          _
        // Predicated region
        $region25: #{tpu_custom_call.1} parent=11 // pred_check
          %p299 = pneg %p134
        $region26: #{tpu_custom_call.1} parent=11 // pred_check_branch
          %301 = sbr.rel (%p299) target = $region28
        $region27: #{tpu_custom_call.1} parent=11 // pred_region
          %303 = vsyncadd [#allocation10], 0
          %s304 = sshll.u32 %s4, 4
          %s305 = int_to_ptr.hbm [resolvable:$true] %s304
          %s306 = sshll.u32 [#allocation11], 4
          %s307 = int_to_ptr.vmem [resolvable:$true] %s306
          %312 = dma.hbm_to_vmem [thread:$0]  %s305, 512, %s307, [#allocation10], 64, 64, 4
        $region28: #{tpu_custom_call.1} parent=11 // pred_fallthru
          _
        // Predicated region
        $region29: #{tpu_custom_call.1} parent=11 // pred_check
          %p313 = pneg %p155
        $region30: #{tpu_custom_call.1} parent=11 // pred_check_branch
          %315 = sbr.rel (%p313) target = $region32
        $region31: #{tpu_custom_call.1} parent=11 // pred_region
          _
        $region32: #{tpu_custom_call.1} parent=11 // pred_fallthru
          _
        // Predicated region
        $region33: #{tpu_custom_call.1} parent=11 // pred_check
          %p316 = pneg %p176
        $region34: #{tpu_custom_call.1} parent=11 // pred_check_branch
          %318 = sbr.rel (%p316) target = $region36
        $region35: #{tpu_custom_call.1} parent=11 // pred_region
          %320 = vsyncadd [#allocation13], 0
          %s321 = sshll.u32 %s6, 4
          %s322 = int_to_ptr.hbm [resolvable:$true] %s321
          %s323 = sshll.u32 [#allocation12], 4
          %s324 = int_to_ptr.vmem [resolvable:$true] %s323
          %329 = dma.hbm_to_vmem [thread:$0]  %s322, 1024, %s324, [#allocation13], 64, 64, 4
        $region36: #{tpu_custom_call.1} parent=11 // pred_fallthru
          _
        // Predicated region
        $region37: #{tpu_custom_call.1} parent=11 // pred_check
          %p330 = pneg %p197
        $region38: #{tpu_custom_call.1} parent=11 // pred_check_branch
          %332 = sbr.rel (%p330) target = $region40
        $region39: #{tpu_custom_call.1} parent=11 // pred_region
          %334 = vsyncadd [#allocation13], 0
          %s335 = sshll.u32 %s7, 4
          %s336 = int_to_ptr.hbm [resolvable:$true] %s335
          %s337 = sshll.u32 [#allocation14], 4
          %s338 = int_to_ptr.vmem [resolvable:$true] %s337
          %343 = dma.hbm_to_vmem [thread:$0]  %s336, 5120, %s338, [#allocation13], 64, 64, 4
        $region40: #{tpu_custom_call.1} parent=11 // pred_fallthru
          _
        // Predicated region
        $region41: #{tpu_custom_call.1} parent=11 // pred_check
          %p344 = pneg %p218
        $region42: #{tpu_custom_call.1} parent=11 // pred_check_branch
          %346 = sbr.rel (%p344) target = $region44
        $region43: #{tpu_custom_call.1} parent=11 // pred_region
          _
        $region44: #{tpu_custom_call.1} parent=11 // pred_fallthru
          _
      $region12: #{tpu_custom_call.1} parent=5 // pred_fallthru
        _
      %p347 = scmp.lt.s32.totalorder %s24, 2
      // Predicated region
      $region45: #{tpu_custom_call.1} parent=5 // pred_check
        %p348 = pneg %p347
      $region46: #{tpu_custom_call.1} parent=5 // pred_check_branch
        %350 = sbr.rel (%p348) target = $region48
      $region47: #{tpu_custom_call.1} parent=5 // pred_region
        // Predicated region
        $region49: #{tpu_custom_call.1} parent=47 // pred_check
          %p351 = pneg %p44
        $region50: #{tpu_custom_call.1} parent=47 // pred_check_branch
          %353 = sbr.rel (%p351) target = $region52
        $region51: #{tpu_custom_call.1} parent=47 // pred_region
          %s354 = sand.u32 %s34, 1
          %s355 = scalar_lea.sflag [#allocation4], %s354
          %s356 = sand.u32 %s34, 1
          %s357 = smul.addr %s356, 8
          %s358 = scalar_lea.vmem [#allocation3], %s357
          %360 = vsyncadd %s355, 0
          %s361 = smul.addr %s24, 2
          %s362 = smul.addr %s361, 4
          %s363 = scalar_lea.hbm %s0, %s362
          %s364 = sshll.u32 %s363, 4
          %s365 = int_to_ptr.hbm [resolvable:$true] %s364
          %s366 = sshll.u32 %s358, 4
          %s367 = int_to_ptr.vmem [resolvable:$true] %s366
          %372 = dma.hbm_to_vmem [thread:$0]  %s365, 128, %s367, %s355, 64, 64, 4
        $region52: #{tpu_custom_call.1} parent=47 // pred_fallthru
          _
      $region48: #{tpu_custom_call.1} parent=5 // pred_fallthru
        _
      %p373 = scmp.le.s32.totalorder 1, %s24
      %p374 = scmp.lt.s32.totalorder %s24, 3
      %p375 = pnand %p373, %p374
      %p376 = pneg %p375
      // Predicated region
      $region53: #{tpu_custom_call.1} parent=5 // pred_check
        _
      $region54: #{tpu_custom_call.1} parent=5 // pred_check_branch
        %378 = sbr.rel (%p375) target = $region56
      $region55: #{tpu_custom_call.1} parent=5 // pred_region
        %s379 = ssub.s32 %s24, 1
        %s380 = sand.u32 %s37, 1
        %s381 = scalar_lea.sflag [#allocation4], %s380
        %s382 = sand.u32 %s37, 1
        %s383 = smul.addr %s382, 8
        %s384 = scalar_lea.vmem [#allocation3], %s383
        // Predicated region
        $region57: #{tpu_custom_call.1} parent=55 // pred_check
          %p385 = pneg %p50
        $region58: #{tpu_custom_call.1} parent=55 // pred_check_branch
          %387 = sbr.rel (%p385) target = $region60
        $region59: #{tpu_custom_call.1} parent=55 // pred_region
          %389 = dma.done %s381, 128
        $region60: #{tpu_custom_call.1} parent=55 // pred_fallthru
          _
        // Predicated region
        $region61: #{tpu_custom_call.1} parent=55 // pred_check
          %p390 = pneg %p71
        $region62: #{tpu_custom_call.1} parent=55 // pred_check_branch
          %392 = sbr.rel (%p390) target = $region64
        $region63: #{tpu_custom_call.1} parent=55 // pred_region
          %394 = dma.done [#allocation7], 2560
        $region64: #{tpu_custom_call.1} parent=55 // pred_fallthru
          _
        // Predicated region
        $region65: #{tpu_custom_call.1} parent=55 // pred_check
          %p395 = pneg %p92
        $region66: #{tpu_custom_call.1} parent=55 // pred_check_branch
          %397 = sbr.rel (%p395) target = $region68
        $region67: #{tpu_custom_call.1} parent=55 // pred_region
          %399 = dma.done [#allocation7], 80
        $region68: #{tpu_custom_call.1} parent=55 // pred_fallthru
          _
        // Predicated region
        $region69: #{tpu_custom_call.1} parent=55 // pred_check
          %p400 = pneg %p113
        $region70: #{tpu_custom_call.1} parent=55 // pred_check_branch
          %402 = sbr.rel (%p400) target = $region72
        $region71: #{tpu_custom_call.1} parent=55 // pred_region
          %404 = dma.done [#allocation10], 2048
        $region72: #{tpu_custom_call.1} parent=55 // pred_fallthru
          _
        // Predicated region
        $region73: #{tpu_custom_call.1} parent=55 // pred_check
          %p405 = pneg %p134
        $region74: #{tpu_custom_call.1} parent=55 // pred_check_branch
          %407 = sbr.rel (%p405) target = $region76
        $region75: #{tpu_custom_call.1} parent=55 // pred_region
          %409 = dma.done [#allocation10], 512
        $region76: #{tpu_custom_call.1} parent=55 // pred_fallthru
          _
        // Predicated region
        $region77: #{tpu_custom_call.1} parent=55 // pred_check
          %p410 = pneg %p176
        $region78: #{tpu_custom_call.1} parent=55 // pred_check_branch
          %412 = sbr.rel (%p410) target = $region80
        $region79: #{tpu_custom_call.1} parent=55 // pred_region
          %414 = dma.done [#allocation13], 1024
        $region80: #{tpu_custom_call.1} parent=55 // pred_fallthru
          _
        // Predicated region
        $region81: #{tpu_custom_call.1} parent=55 // pred_check
          %p415 = pneg %p197
        $region82: #{tpu_custom_call.1} parent=55 // pred_check_branch
          %417 = sbr.rel (%p415) target = $region84
        $region83: #{tpu_custom_call.1} parent=55 // pred_region
          %419 = dma.done [#allocation13], 5120
        $region84: #{tpu_custom_call.1} parent=55 // pred_fallthru
          _
        %s420 = sand.u32 %s37, 1
        %s421 = scalar_lea.sflag [#allocation4], %s420
        %s422 = sand.u32 %s37, 1
        %s423 = smul.addr %s422, 8
        %s424 = scalar_lea.vmem [#allocation3], %s423
        %p425 = pneg %p50
        %p426 = pneg %p47
        %p427 = pneg %p71
        %p428 = pneg %p68
        %p429 = pneg %p92
        %p430 = pneg %p89
        %p431 = pneg %p113
        %p432 = pneg %p110
        %p433 = pneg %p134
        %p434 = pneg %p131
        %p435 = pneg %p155
        %p436 = pneg %p152
        %p437 = pneg %p176
        %p438 = pneg %p173
        %p439 = pneg %p197
        %p440 = pneg %p194
        %p441 = pneg %p218
        %p442 = pneg %p215
        %p443 = pneg %p244
        %p444 = pneg %p241
        %s445 = sand.u32 %s231, 1
        %s446 = scalar_lea.sflag [#allocation5], %s445
        %s447 = sand.u32 %s231, 1
        %s448 = smul.addr %s447, 16
        %s449 = scalar_lea.vmem [#allocation15], %s448
        %v451 = vld [vmem:[%s384] sm:$0xf]
        %v452 = vld [vmem:[%s384 + $0x4] sm:$0xf]
        %vm453 = vcmask 519168
        %454 = vst.msk [vmem:[#allocation2] sm:$0xf] %vm453, 0
        %vm455 = vcmask 517120
        %456 = vst.msk [vmem:[#allocation2 + $0x4] sm:$0x3] %vm455, 0
        %vm457 = vcmask 519170
        %458 = vst.msk [vmem:[#allocation2 + $0xc] sm:$0xc] %vm457, 0
        %459 = vst.msk [vmem:[#allocation2 + $0x10] sm:$0xf] %vm453, 0
        %vm462 = vcmask 1041408
        %vm463 = vcmask 1045508
        %vm464 = vmor %vm462, %vm463
        %v465 = vrot.slane %v451, 6
        %v466 = vrot.slane %v465, 4
        %v467 = vrot.slane %v452, 6
        %v468 = vsel %vm464, %v466, %v467
        %v469 = vrot.slane %v467, 4
        %473 = vst.msk [vmem:[#allocation2 + $0x4] sm:$0xc] %vm457, %v465
        %474 = vst.msk [vmem:[#allocation2 + $0x8] sm:$0xf] %vm453, %v468
        %475 = vst.msk [vmem:[#allocation2 + $0xc] sm:$0x3] %vm455, %v469
        %v476 = vld [vmem:[#allocation6] sm:$0xff]
        %v477 = vld [vmem:[#allocation6 + $0x8] sm:$0xff]
        %v478 = vld [vmem:[#allocation6 + $0x10] sm:$0xf]
        %v479 = vld [vmem:[#allocation6 + $0x14] sm:$0xff]
        %v480 = vld [vmem:[#allocation6 + $0x1c] sm:$0xff]
        %v481 = vld [vmem:[#allocation6 + $0x24] sm:$0xf]
        %v482 = vld [vmem:[#allocation6 + $0x28] sm:$0xff]
        %v483 = vld [vmem:[#allocation6 + $0x30] sm:$0xff]
        %v484 = vld [vmem:[#allocation6 + $0x38] sm:$0xf]
        %v485 = vld [vmem:[#allocation6 + $0x3c] sm:$0xff]
        %v486 = vld [vmem:[#allocation6 + $0x44] sm:$0xff]
        %v487 = vld [vmem:[#allocation6 + $0x4c] sm:$0xf]
        %v488 = vld [vmem:[#allocation6 + $0x50] sm:$0xff]
        %v489 = vld [vmem:[#allocation6 + $0x58] sm:$0xff]
        %v490 = vld [vmem:[#allocation6 + $0x60] sm:$0xf]
        %v491 = vld [vmem:[#allocation6 + $0x64] sm:$0xff]
        %v492 = vld [vmem:[#allocation6 + $0x6c] sm:$0xff]
        %v493 = vld [vmem:[#allocation6 + $0x74] sm:$0xf]
        %v494 = vld [vmem:[#allocation6 + $0x78] sm:$0xff]
        %v495 = vld [vmem:[#allocation6 + $0x80] sm:$0xff]
        %v496 = vld [vmem:[#allocation6 + $0x88] sm:$0xf]
        %v497 = vld [vmem:[#allocation6 + $0x8c] sm:$0xff]
        %v498 = vld [vmem:[#allocation6 + $0x94] sm:$0xff]
        %v499 = vld [vmem:[#allocation6 + $0x9c] sm:$0xf]
        %v500 = vld [vmem:[#allocation8] sm:$0x1f]
        %v502 = vperm.slane %v500, 0
        %v503 = vperm.slane %v500, 1
        %v504 = vperm.slane %v500, 2
        %v505 = vperm.slane %v500, 3
        %v506 = vperm.slane %v500, 4
        %v512 = vunpack.c.l.b16 %v451
        %v513 = vunpack.c.l.b16 %v452
        %v514 = vpack.c.b16 %v513, %v512
        %v539 = vunpack.c.l.b16 %v476
        %v540 = vunpack.c.h.b16 %v476
        %v541 = vunpack.c.l.b16 %v477
        %v542 = vunpack.c.h.b16 %v477
        %v543 = vunpack.c.l.b16 %v478
        %v544 = vunpack.c.l.b16 %v479
        %v545 = vunpack.c.h.b16 %v479
        %v546 = vunpack.c.l.b16 %v480
        %v547 = vunpack.c.h.b16 %v480
        %v548 = vunpack.c.l.b16 %v481
        %v549 = vunpack.c.l.b16 %v482
        %v550 = vunpack.c.h.b16 %v482
        %v551 = vunpack.c.l.b16 %v483
        %v552 = vunpack.c.h.b16 %v483
        %v553 = vunpack.c.l.b16 %v484
        %v554 = vunpack.c.l.b16 %v485
        %v555 = vunpack.c.h.b16 %v485
        %v556 = vunpack.c.l.b16 %v486
        %v557 = vunpack.c.h.b16 %v486
        %v558 = vunpack.c.l.b16 %v487
        %v559 = vunpack.c.l.b16 %v488
        %v560 = vunpack.c.h.b16 %v488
        %v561 = vunpack.c.l.b16 %v489
        %v562 = vunpack.c.h.b16 %v489
        %v563 = vunpack.c.l.b16 %v490
        %v564 = vunpack.c.l.b16 %v491
        %v565 = vunpack.c.h.b16 %v491
        %v566 = vunpack.c.l.b16 %v492
        %v567 = vunpack.c.h.b16 %v492
        %v568 = vunpack.c.l.b16 %v493
        %v569 = vunpack.c.l.b16 %v494
        %v570 = vunpack.c.h.b16 %v494
        %v571 = vunpack.c.l.b16 %v495
        %v572 = vunpack.c.h.b16 %v495
        %v573 = vunpack.c.l.b16 %v496
        %v574 = vunpack.c.l.b16 %v497
        %v575 = vunpack.c.h.b16 %v497
        %v576 = vunpack.c.l.b16 %v498
        %v577 = vunpack.c.h.b16 %v498
        %v578 = vunpack.c.l.b16 %v499
        %v579 = vpack.c.b16 %v544, %v539
        %v580 = vpack.c.b16 %v545, %v540
        %v581 = vpack.c.b16 %v546, %v541
        %v582 = vpack.c.b16 %v547, %v542
        %v583 = vpack.c.b16 %v548, %v543
        %v584 = vpack.c.b16 %v554, %v549
        %v585 = vpack.c.b16 %v555, %v550
        %v586 = vpack.c.b16 %v556, %v551
        %v587 = vpack.c.b16 %v557, %v552
        %v588 = vpack.c.b16 %v558, %v553
        %v589 = vpack.c.b16 %v564, %v559
        %v590 = vpack.c.b16 %v565, %v560
        %v591 = vpack.c.b16 %v566, %v561
        %v592 = vpack.c.b16 %v567, %v562
        %v593 = vpack.c.b16 %v568, %v563
        %v594 = vpack.c.b16 %v574, %v569
        %v595 = vpack.c.b16 %v575, %v570
        %v596 = vpack.c.b16 %v576, %v571
        %v597 = vpack.c.b16 %v577, %v572
        %v598 = vpack.c.b16 %v578, %v573
        %vm619 = vcmask 523264
        %v621 = vsel %vm619, %v514, 0
        %623 = vmatpush.bf16.msra.mxu0 0
        %624 = vmatpush.bf16.msra.mxu0 0
        %625 = vmatpush.bf16.msra.mxu0 0
        %626 = vmatpush.bf16.msra.mxu0 0
        %627 = vmatpush.bf16.msra.mxu0 %v594
        %628 = vmatpush.bf16.msra.mxu0 %v589
        %629 = vmatpush.bf16.msra.mxu0 %v584
        %630 = vmatpush.bf16.msra.mxu0 %v579
        %631 = vmatmul.bf16.gmra.mxu0 %v621
        %v632 = vpop.f32.mrf.mxu0
        %v633 = vadd.f32 %v502, %v632
        %v634 = vpop.f32.mrf.mxu0
        %v635 = vadd.f32 %v502, %v634
        %636 = vdwg.mxu0
        %637 = vmatpush.bf16.msra.mxu0 0
        %638 = vmatpush.bf16.msra.mxu0 0
        %639 = vmatpush.bf16.msra.mxu0 0
        %640 = vmatpush.bf16.msra.mxu0 0
        %641 = vmatpush.bf16.msra.mxu0 %v595
        %642 = vmatpush.bf16.msra.mxu0 %v590
        %643 = vmatpush.bf16.msra.mxu0 %v585
        %644 = vmatpush.bf16.msra.mxu0 %v580
        %645 = vmatmul.bf16.gmra.mxu0 %v621
        %v646 = vpop.f32.mrf.mxu0
        %v647 = vadd.f32 %v503, %v646
        %v648 = vpop.f32.mrf.mxu0
        %v649 = vadd.f32 %v503, %v648
        %650 = vdwg.mxu0
        %651 = vmatpush.bf16.msra.mxu0 0
        %652 = vmatpush.bf16.msra.mxu0 0
        %653 = vmatpush.bf16.msra.mxu0 0
        %654 = vmatpush.bf16.msra.mxu0 0
        %655 = vmatpush.bf16.msra.mxu0 %v596
        %656 = vmatpush.bf16.msra.mxu0 %v591
        %657 = vmatpush.bf16.msra.mxu0 %v586
        %658 = vmatpush.bf16.msra.mxu0 %v581
        %659 = vmatmul.bf16.gmra.mxu0 %v621
        %v660 = vpop.f32.mrf.mxu0
        %v661 = vadd.f32 %v504, %v660
        %v662 = vpop.f32.mrf.mxu0
        %v663 = vadd.f32 %v504, %v662
        %664 = vdwg.mxu0
        %665 = vmatpush.bf16.msra.mxu0 0
        %666 = vmatpush.bf16.msra.mxu0 0
        %667 = vmatpush.bf16.msra.mxu0 0
        %668 = vmatpush.bf16.msra.mxu0 0
        %669 = vmatpush.bf16.msra.mxu0 %v597
        %670 = vmatpush.bf16.msra.mxu0 %v592
        %671 = vmatpush.bf16.msra.mxu0 %v587
        %672 = vmatpush.bf16.msra.mxu0 %v582
        %673 = vmatmul.bf16.gmra.mxu0 %v621
        %v674 = vpop.f32.mrf.mxu0
        %v675 = vadd.f32 %v505, %v674
        %v676 = vpop.f32.mrf.mxu0
        %v677 = vadd.f32 %v505, %v676
        %678 = vdwg.mxu0
        %679 = vmatpush.bf16.msra.mxu0 0
        %680 = vmatpush.bf16.msra.mxu0 0
        %681 = vmatpush.bf16.msra.mxu0 0
        %682 = vmatpush.bf16.msra.mxu0 0
        %683 = vmatpush.bf16.msra.mxu0 %v598
        %684 = vmatpush.bf16.msra.mxu0 %v593
        %685 = vmatpush.bf16.msra.mxu0 %v588
        %686 = vmatpush.bf16.msra.mxu0 %v583
        %687 = vmatmul.bf16.gmra.mxu0 %v621
        %v688 = vpop.f32.mrf.mxu0
        %v689 = vadd.f32 %v506, %v688
        %v690 = vpop.f32.mrf.mxu0
        %v691 = vadd.f32 %v506, %v690
        %692 = vdwg.mxu0
        %v693 = vmax.f32 %v633, 0.0
        %v694 = vmax.f32 %v635, 0.0
        %v695 = vpack.c.bf16 %v693, %v693
        %v696 = vpack.c.bf16 %v694, %v694
        %v697 = vld [vmem:[#allocation2] sm:$0x8]
        %v698 = vld [vmem:[#allocation2 + $0x4] sm:$0xf]
        %v699 = vld [vmem:[#allocation2 + $0x8] sm:$0x7]
        %v700 = vld [vmem:[#allocation2 + $0x8] sm:$0xe]
        %v701 = vld [vmem:[#allocation2 + $0xc] sm:$0xf]
        %v702 = vld [vmem:[#allocation2 + $0x10] sm:$0x1]
        %v703 = vld [vmem:[#allocation9] sm:$0xf]
        %v704 = vld [vmem:[#allocation9 + $0x4] sm:$0xf]
        %v705 = vld [vmem:[#allocation9 + $0x8] sm:$0xf]
        %v706 = vld [vmem:[#allocation9 + $0xc] sm:$0xf]
        %v707 = vld [vmem:[#allocation9 + $0x10] sm:$0xf]
        %v708 = vld [vmem:[#allocation9 + $0x14] sm:$0xf]
        %v709 = vld [vmem:[#allocation9 + $0x18] sm:$0xf]
        %v710 = vld [vmem:[#allocation9 + $0x1c] sm:$0xf]
        %v714 = vunpack.c.l.b16 %v697
        %v715 = vunpack.c.l.b16 %v698
        %v716 = vunpack.c.l.b16 %v699
        %v717 = vpack.c.b16 %v715, %v714
        %v718 = vpack.c.b16 %v716, %v716
        %vm719 = vcmask 1044480
        %v720 = vrot.slane %v717, 3
        %v721 = vrot.slane %v718, 3
        %v722 = vsel %vm719, %v720, %v721
        %v731 = vunpack.c.l.b16 %v703
        %v732 = vunpack.c.l.b16 %v704
        %v733 = vunpack.c.l.b16 %v705
        %v734 = vunpack.c.l.b16 %v706
        %v735 = vunpack.c.l.b16 %v707
        %v736 = vunpack.c.l.b16 %v708
        %v737 = vunpack.c.l.b16 %v709
        %v738 = vunpack.c.l.b16 %v710
        %v739 = vpack.c.b16 %v732, %v731
        %v740 = vpack.c.b16 %v734, %v733
        %v741 = vpack.c.b16 %v736, %v735
        %v742 = vpack.c.b16 %v738, %v737
        %v748 = vsel %vm619, %v722, 0
        %750 = vmatpush.bf16.msra.mxu0 0
        %751 = vmatpush.bf16.msra.mxu0 0
        %752 = vmatpush.bf16.msra.mxu0 0
        %753 = vmatpush.bf16.msra.mxu0 0
        %754 = vmatpush.bf16.msra.mxu0 %v742
        %755 = vmatpush.bf16.msra.mxu0 %v741
        %756 = vmatpush.bf16.msra.mxu0 %v740
        %757 = vmatpush.bf16.msra.mxu0 %v739
        %758 = vmatmul.bf16.gmra.mxu0 %v748
        %v759 = vpop.f32.mrf.mxu0
        %v760 = vadd.f32 0.0, %v759
        %v761 = vpop.f32.mrf.mxu0
        %v762 = vadd.f32 0.0, %v761
        %763 = vdwg.mxu0
        %v764 = vadd.f32 %v647, %v760
        %v765 = vadd.f32 %v649, %v762
        %s766 = scalar_lea.vmem [#allocation9], 32
        %v767 = vld [vmem:[%s766] sm:$0xf]
        %v768 = vld [vmem:[%s766 + $0x4] sm:$0xf]
        %v769 = vld [vmem:[%s766 + $0x8] sm:$0xf]
        %v770 = vld [vmem:[%s766 + $0xc] sm:$0xf]
        %v771 = vld [vmem:[%s766 + $0x10] sm:$0xf]
        %v772 = vld [vmem:[%s766 + $0x14] sm:$0xf]
        %v773 = vld [vmem:[%s766 + $0x18] sm:$0xf]
        %v774 = vld [vmem:[%s766 + $0x1c] sm:$0xf]
        %v778 = vunpack.c.l.b16 %v700
        %v779 = vunpack.c.l.b16 %v701
        %v780 = vunpack.c.l.b16 %v702
        %v781 = vpack.c.b16 %v779, %v778
        %v782 = vpack.c.b16 %v780, %v780
        %vm783 = vcmask 1046528
        %v784 = vrot.slane %v781, 1
        %v785 = vrot.slane %v782, 1
        %v786 = vsel %vm783, %v784, %v785
        %v795 = vunpack.c.l.b16 %v767
        %v796 = vunpack.c.l.b16 %v768
        %v797 = vunpack.c.l.b16 %v769
        %v798 = vunpack.c.l.b16 %v770
        %v799 = vunpack.c.l.b16 %v771
        %v800 = vunpack.c.l.b16 %v772
        %v801 = vunpack.c.l.b16 %v773
        %v802 = vunpack.c.l.b16 %v774
        %v803 = vpack.c.b16 %v796, %v795
        %v804 = vpack.c.b16 %v798, %v797
        %v805 = vpack.c.b16 %v800, %v799
        %v806 = vpack.c.b16 %v802, %v801
        %v812 = vsel %vm619, %v786, 0
        %814 = vmatpush.bf16.msra.mxu0 0
        %815 = vmatpush.bf16.msra.mxu0 0
        %816 = vmatpush.bf16.msra.mxu0 0
        %817 = vmatpush.bf16.msra.mxu0 0
        %818 = vmatpush.bf16.msra.mxu0 %v806
        %819 = vmatpush.bf16.msra.mxu0 %v805
        %820 = vmatpush.bf16.msra.mxu0 %v804
        %821 = vmatpush.bf16.msra.mxu0 %v803
        %822 = vmatmul.bf16.gmra.mxu0 %v812
        %v823 = vpop.f32.mrf.mxu0
        %v824 = vadd.f32 0.0, %v823
        %v825 = vpop.f32.mrf.mxu0
        %v826 = vadd.f32 0.0, %v825
        %827 = vdwg.mxu0
        %v828 = vadd.f32 %v764, %v824
        %v829 = vadd.f32 %v765, %v826
        %v830 = vmax.f32 %v828, 0.0
        %v831 = vmax.f32 %v829, 0.0
        %v832 = vpack.c.bf16 %v830, %v830
        %v833 = vpack.c.bf16 %v831, %v831
        %v834 = vld [vmem:[#allocation2] sm:$0xf]
        %v835 = vld [vmem:[#allocation2 + $0x4] sm:$0xf]
        %v836 = vld [vmem:[#allocation2 + $0x10] sm:$0xf]
        %s837 = scalar_lea.vmem [#allocation9], 64
        %v838 = vld [vmem:[%s837] sm:$0xf]
        %v839 = vld [vmem:[%s837 + $0x4] sm:$0xf]
        %v840 = vld [vmem:[%s837 + $0x8] sm:$0xf]
        %v841 = vld [vmem:[%s837 + $0xc] sm:$0xf]
        %v842 = vld [vmem:[%s837 + $0x10] sm:$0xf]
        %v843 = vld [vmem:[%s837 + $0x14] sm:$0xf]
        %v844 = vld [vmem:[%s837 + $0x18] sm:$0xf]
        %v845 = vld [vmem:[%s837 + $0x1c] sm:$0xf]
        %v848 = vunpack.c.l.b16 %v834
        %v849 = vunpack.c.l.b16 %v835
        %v850 = vpack.c.b16 %v849, %v848
        %v859 = vunpack.c.l.b16 %v838
        %v860 = vunpack.c.l.b16 %v839
        %v861 = vunpack.c.l.b16 %v840
        %v862 = vunpack.c.l.b16 %v841
        %v863 = vunpack.c.l.b16 %v842
        %v864 = vunpack.c.l.b16 %v843
        %v865 = vunpack.c.l.b16 %v844
        %v866 = vunpack.c.l.b16 %v845
        %v867 = vpack.c.b16 %v860, %v859
        %v868 = vpack.c.b16 %v862, %v861
        %v869 = vpack.c.b16 %v864, %v863
        %v870 = vpack.c.b16 %v866, %v865
        %v876 = vsel %vm619, %v850, 0
        %878 = vmatpush.bf16.msra.mxu0 0
        %879 = vmatpush.bf16.msra.mxu0 0
        %880 = vmatpush.bf16.msra.mxu0 0
        %881 = vmatpush.bf16.msra.mxu0 0
        %882 = vmatpush.bf16.msra.mxu0 %v870
        %883 = vmatpush.bf16.msra.mxu0 %v869
        %884 = vmatpush.bf16.msra.mxu0 %v868
        %885 = vmatpush.bf16.msra.mxu0 %v867
        %886 = vmatmul.bf16.gmra.mxu0 %v876
        %v887 = vpop.f32.mrf.mxu0
        %v888 = vadd.f32 0.0, %v887
        %v889 = vpop.f32.mrf.mxu0
        %v890 = vadd.f32 0.0, %v889
        %891 = vdwg.mxu0
        %v892 = vadd.f32 %v661, %v888
        %v893 = vadd.f32 %v663, %v890
        %s894 = scalar_lea.vmem [#allocation9], 96
        %v895 = vld [vmem:[%s894] sm:$0xf]
        %v896 = vld [vmem:[%s894 + $0x4] sm:$0xf]
        %v897 = vld [vmem:[%s894 + $0x8] sm:$0xf]
        %v898 = vld [vmem:[%s894 + $0xc] sm:$0xf]
        %v899 = vld [vmem:[%s894 + $0x10] sm:$0xf]
        %v900 = vld [vmem:[%s894 + $0x14] sm:$0xf]
        %v901 = vld [vmem:[%s894 + $0x18] sm:$0xf]
        %v902 = vld [vmem:[%s894 + $0x1c] sm:$0xf]
        %v904 = vunpack.c.l.b16 %v836
        %v905 = vpack.c.b16 %v904, %v779
        %v914 = vunpack.c.l.b16 %v895
        %v915 = vunpack.c.l.b16 %v896
        %v916 = vunpack.c.l.b16 %v897
        %v917 = vunpack.c.l.b16 %v898
        %v918 = vunpack.c.l.b16 %v899
        %v919 = vunpack.c.l.b16 %v900
        %v920 = vunpack.c.l.b16 %v901
        %v921 = vunpack.c.l.b16 %v902
        %v922 = vpack.c.b16 %v915, %v914
        %v923 = vpack.c.b16 %v917, %v916
        %v924 = vpack.c.b16 %v919, %v918
        %v925 = vpack.c.b16 %v921, %v920
        %v931 = vsel %vm619, %v905, 0
        %933 = vmatpush.bf16.msra.mxu0 0
        %934 = vmatpush.bf16.msra.mxu0 0
        %935 = vmatpush.bf16.msra.mxu0 0
        %936 = vmatpush.bf16.msra.mxu0 0
        %937 = vmatpush.bf16.msra.mxu0 %v925
        %938 = vmatpush.bf16.msra.mxu0 %v924
        %939 = vmatpush.bf16.msra.mxu0 %v923
        %940 = vmatpush.bf16.msra.mxu0 %v922
        %941 = vmatmul.bf16.gmra.mxu0 %v931
        %v942 = vpop.f32.mrf.mxu0
        %v943 = vadd.f32 0.0, %v942
        %v944 = vpop.f32.mrf.mxu0
        %v945 = vadd.f32 0.0, %v944
        %946 = vdwg.mxu0
        %v947 = vadd.f32 %v892, %v943
        %v948 = vadd.f32 %v893, %v945
        %v949 = vmax.f32 %v947, 0.0
        %v950 = vmax.f32 %v948, 0.0
        %v951 = vpack.c.bf16 %v949, %v949
        %v952 = vpack.c.bf16 %v950, %v950
        %v953 = vmax.f32 %v675, 0.0
        %v954 = vmax.f32 %v677, 0.0
        %v955 = vpack.c.bf16 %v953, %v953
        %v956 = vpack.c.bf16 %v954, %v954
        %v957 = vmax.f32 %v689, 0.0
        %v958 = vmax.f32 %v691, 0.0
        %v959 = vpack.c.bf16 %v957, %v957
        %v960 = vpack.c.bf16 %v958, %v958
        %v963 = vunpack.c.l.b16 %v695
        %v964 = vunpack.c.l.b16 %v696
        %v965 = vpack.c.b16 %v964, %v963
        %v969 = vunpack.c.l.b16 %v832
        %v970 = vunpack.c.l.b16 %v833
        %v971 = vpack.c.b16 %v970, %v969
        %v975 = vunpack.c.l.b16 %v951
        %v976 = vunpack.c.l.b16 %v952
        %v977 = vpack.c.b16 %v976, %v975
        %v981 = vunpack.c.l.b16 %v955
        %v982 = vunpack.c.l.b16 %v956
        %v983 = vpack.c.b16 %v982, %v981
        %v987 = vunpack.c.l.b16 %v959
        %v988 = vunpack.c.l.b16 %v960
        %v989 = vpack.c.b16 %v988, %v987
        %v991 = vld [vmem:[#allocation14] sm:$0xf]
        %v992 = vld [vmem:[#allocation14 + $0x4] sm:$0xf]
        %v993 = vld [vmem:[#allocation14 + $0x8] sm:$0xf]
        %v994 = vld [vmem:[#allocation14 + $0xc] sm:$0xf]
        %v995 = vld [vmem:[#allocation14 + $0x10] sm:$0xf]
        %v996 = vld [vmem:[#allocation14 + $0x14] sm:$0xf]
        %v997 = vld [vmem:[#allocation14 + $0x18] sm:$0xf]
        %v998 = vld [vmem:[#allocation14 + $0x1c] sm:$0xf]
        %v999 = vld [vmem:[#allocation14 + $0x20] sm:$0xf]
        %v1000 = vld [vmem:[#allocation14 + $0x24] sm:$0xf]
        %v1001 = vld [vmem:[#allocation14 + $0x28] sm:$0xf]
        %v1002 = vld [vmem:[#allocation14 + $0x2c] sm:$0xf]
        %v1003 = vld [vmem:[#allocation14 + $0x30] sm:$0xf]
        %v1004 = vld [vmem:[#allocation14 + $0x34] sm:$0xf]
        %v1005 = vld [vmem:[#allocation14 + $0x38] sm:$0xf]
        %v1006 = vld [vmem:[#allocation14 + $0x3c] sm:$0xf]
        %v1007 = vld [vmem:[#allocation14 + $0x40] sm:$0xf]
        %v1008 = vld [vmem:[#allocation14 + $0x44] sm:$0xf]
        %v1009 = vld [vmem:[#allocation14 + $0x48] sm:$0xf]
        %v1010 = vld [vmem:[#allocation14 + $0x4c] sm:$0xf]
        %v1011 = vld [vmem:[#allocation14 + $0x50] sm:$0xf]
        %v1012 = vld [vmem:[#allocation14 + $0x54] sm:$0xf]
        %v1013 = vld [vmem:[#allocation14 + $0x58] sm:$0xf]
        %v1014 = vld [vmem:[#allocation14 + $0x5c] sm:$0xf]
        %v1015 = vld [vmem:[#allocation14 + $0x60] sm:$0xf]
        %v1016 = vld [vmem:[#allocation14 + $0x64] sm:$0xf]
        %v1017 = vld [vmem:[#allocation14 + $0x68] sm:$0xf]
        %v1018 = vld [vmem:[#allocation14 + $0x6c] sm:$0xf]
        %v1019 = vld [vmem:[#allocation14 + $0x70] sm:$0xf]
        %v1020 = vld [vmem:[#allocation14 + $0x74] sm:$0xf]
        %v1021 = vld [vmem:[#allocation14 + $0x78] sm:$0xf]
        %v1022 = vld [vmem:[#allocation14 + $0x7c] sm:$0xf]
        %v1023 = vld [vmem:[#allocation14 + $0x80] sm:$0xf]
        %v1024 = vld [vmem:[#allocation14 + $0x84] sm:$0xf]
        %v1025 = vld [vmem:[#allocation14 + $0x88] sm:$0xf]
        %v1026 = vld [vmem:[#allocation14 + $0x8c] sm:$0xf]
        %v1027 = vld [vmem:[#allocation14 + $0x90] sm:$0xf]
        %v1028 = vld [vmem:[#allocation14 + $0x94] sm:$0xf]
        %v1029 = vld [vmem:[#allocation14 + $0x98] sm:$0xf]
        %v1030 = vld [vmem:[#allocation14 + $0x9c] sm:$0xf]
        %v1031 = vld [vmem:[#allocation14 + $0xa0] sm:$0xf]
        %v1032 = vld [vmem:[#allocation14 + $0xa4] sm:$0xf]
        %v1033 = vld [vmem:[#allocation14 + $0xa8] sm:$0xf]
        %v1034 = vld [vmem:[#allocation14 + $0xac] sm:$0xf]
        %v1035 = vld [vmem:[#allocation14 + $0xb0] sm:$0xf]
        %v1036 = vld [vmem:[#allocation14 + $0xb4] sm:$0xf]
        %v1037 = vld [vmem:[#allocation14 + $0xb8] sm:$0xf]
        %v1038 = vld [vmem:[#allocation14 + $0xbc] sm:$0xf]
        %v1039 = vld [vmem:[#allocation14 + $0xc0] sm:$0xf]
        %v1040 = vld [vmem:[#allocation14 + $0xc4] sm:$0xf]
        %v1041 = vld [vmem:[#allocation14 + $0xc8] sm:$0xf]
        %v1042 = vld [vmem:[#allocation14 + $0xcc] sm:$0xf]
        %v1043 = vld [vmem:[#allocation14 + $0xd0] sm:$0xf]
        %v1044 = vld [vmem:[#allocation14 + $0xd4] sm:$0xf]
        %v1045 = vld [vmem:[#allocation14 + $0xd8] sm:$0xf]
        %v1046 = vld [vmem:[#allocation14 + $0xdc] sm:$0xf]
        %v1047 = vld [vmem:[#allocation14 + $0xe0] sm:$0xf]
        %v1048 = vld [vmem:[#allocation14 + $0xe4] sm:$0xf]
        %v1049 = vld [vmem:[#allocation14 + $0xe8] sm:$0xf]
        %v1050 = vld [vmem:[#allocation14 + $0xec] sm:$0xf]
        %v1051 = vld [vmem:[#allocation14 + $0xf0] sm:$0xf]
        %v1052 = vld [vmem:[#allocation14 + $0xf4] sm:$0xf]
        %v1053 = vld [vmem:[#allocation14 + $0xf8] sm:$0xf]
        %v1054 = vld [vmem:[#allocation14 + $0xfc] sm:$0xf]
        %v1055 = vld [vmem:[#allocation14 + $0x100] sm:$0xf]
        %v1056 = vld [vmem:[#allocation14 + $0x104] sm:$0xf]
        %v1057 = vld [vmem:[#allocation14 + $0x108] sm:$0xf]
        %v1058 = vld [vmem:[#allocation14 + $0x10c] sm:$0xf]
        %v1059 = vld [vmem:[#allocation14 + $0x110] sm:$0xf]
        %v1060 = vld [vmem:[#allocation14 + $0x114] sm:$0xf]
        %v1061 = vld [vmem:[#allocation14 + $0x118] sm:$0xf]
        %v1062 = vld [vmem:[#allocation14 + $0x11c] sm:$0xf]
        %v1063 = vld [vmem:[#allocation14 + $0x120] sm:$0xf]
        %v1064 = vld [vmem:[#allocation14 + $0x124] sm:$0xf]
        %v1065 = vld [vmem:[#allocation14 + $0x128] sm:$0xf]
        %v1066 = vld [vmem:[#allocation14 + $0x12c] sm:$0xf]
        %v1067 = vld [vmem:[#allocation14 + $0x130] sm:$0xf]
        %v1068 = vld [vmem:[#allocation14 + $0x134] sm:$0xf]
        %v1069 = vld [vmem:[#allocation14 + $0x138] sm:$0xf]
        %v1070 = vld [vmem:[#allocation14 + $0x13c] sm:$0xf]
        %v1071 = vunpack.c.l.bf16 %v451
        %v1072 = vunpack.c.l.bf16 %v452
        %v1073 = vsel %vm619, %v1071, 0.0
        %v1074 = vsel %vm619, %v1072, 0.0
        %v1075 = vadd.f32 %v1073, %v1074
        %v1076 = vrot.slane %v1075, 4
        %v1077 = vadd.f32 %v1075, %v1076
        %v1078 = vrot.slane %v1077, 2
        %v1079 = vadd.f32 %v1077, %v1078
        %v1080 = vrot.slane %v1079, 1
        %v1081 = vadd.f32 %v1079, %v1080
        %v1082 = vpack.c.bf16 %v1081, %v1081
        %v1083 = vld [vmem:[#allocation11] sm:$0xf]
        %v1084 = vld [vmem:[#allocation11 + $0x4] sm:$0xf]
        %v1085 = vld [vmem:[#allocation11 + $0x8] sm:$0xf]
        %v1086 = vld [vmem:[#allocation11 + $0xc] sm:$0xf]
        %v1087 = vld [vmem:[#allocation11 + $0x10] sm:$0xf]
        %v1088 = vld [vmem:[#allocation11 + $0x14] sm:$0xf]
        %v1089 = vld [vmem:[#allocation11 + $0x18] sm:$0xf]
        %v1090 = vld [vmem:[#allocation11 + $0x1c] sm:$0xf]
        %v1091 = vld [vmem:[%s5] sm:$0x1]
        %v1100 = vunpack.c.l.b16 %v1083
        %v1101 = vunpack.c.l.b16 %v1084
        %v1102 = vunpack.c.l.b16 %v1085
        %v1103 = vunpack.c.l.b16 %v1086
        %v1104 = vunpack.c.l.b16 %v1087
        %v1105 = vunpack.c.l.b16 %v1088
        %v1106 = vunpack.c.l.b16 %v1089
        %v1107 = vunpack.c.l.b16 %v1090
        %v1108 = vpack.c.b16 %v1101, %v1100
        %v1109 = vpack.c.b16 %v1103, %v1102
        %v1110 = vpack.c.b16 %v1105, %v1104
        %v1111 = vpack.c.b16 %v1107, %v1106
        %v1117 = vsel %vm619, %v1082, 0
        %1119 = vmatpush.bf16.msra.mxu0 0
        %1120 = vmatpush.bf16.msra.mxu0 0
        %1121 = vmatpush.bf16.msra.mxu0 0
        %1122 = vmatpush.bf16.msra.mxu0 0
        %1123 = vmatpush.bf16.msra.mxu0 %v1111
        %1124 = vmatpush.bf16.msra.mxu0 %v1110
        %1125 = vmatpush.bf16.msra.mxu0 %v1109
        %1126 = vmatpush.bf16.msra.mxu0 %v1108
        %1127 = vmatmul.bf16.gmra.mxu0 %v1117
        %v1128 = vpop.f32.mrf.mxu0
        %v1129 = vadd.f32 %v1091, %v1128
        %v1130 = vpop.f32.mrf.mxu0
        %1131 = vdwg.mxu0
        %v1132 = vmax.f32 %v1129, 0.0
        %v1133 = vpack.c.bf16 %v1132, %v1132
        %v1134 = vld [vmem:[#allocation12] sm:$0xf]
        %v1135 = vld [vmem:[#allocation12 + $0x4] sm:$0xf]
        %v1136 = vld [vmem:[#allocation12 + $0x8] sm:$0xf]
        %v1137 = vld [vmem:[#allocation12 + $0xc] sm:$0xf]
        %v1138 = vld [vmem:[#allocation12 + $0x10] sm:$0xf]
        %v1139 = vld [vmem:[#allocation12 + $0x14] sm:$0xf]
        %v1140 = vld [vmem:[#allocation12 + $0x18] sm:$0xf]
        %v1141 = vld [vmem:[#allocation12 + $0x1c] sm:$0xf]
        %v1142 = vld [vmem:[#allocation12 + $0x20] sm:$0xf]
        %v1143 = vld [vmem:[#allocation12 + $0x24] sm:$0xf]
        %v1144 = vld [vmem:[#allocation12 + $0x28] sm:$0xf]
        %v1145 = vld [vmem:[#allocation12 + $0x2c] sm:$0xf]
        %v1146 = vld [vmem:[#allocation12 + $0x30] sm:$0xf]
        %v1147 = vld [vmem:[#allocation12 + $0x34] sm:$0xf]
        %v1148 = vld [vmem:[#allocation12 + $0x38] sm:$0xf]
        %v1149 = vld [vmem:[#allocation12 + $0x3c] sm:$0xf]
        %v1166 = vunpack.c.l.b16 %v1134
        %v1167 = vunpack.c.l.b16 %v1135
        %v1168 = vunpack.c.l.b16 %v1136
        %v1169 = vunpack.c.l.b16 %v1137
        %v1170 = vunpack.c.l.b16 %v1138
        %v1171 = vunpack.c.l.b16 %v1139
        %v1172 = vunpack.c.l.b16 %v1140
        %v1173 = vunpack.c.l.b16 %v1141
        %v1174 = vunpack.c.l.b16 %v1142
        %v1175 = vunpack.c.l.b16 %v1143
        %v1176 = vunpack.c.l.b16 %v1144
        %v1177 = vunpack.c.l.b16 %v1145
        %v1178 = vunpack.c.l.b16 %v1146
        %v1179 = vunpack.c.l.b16 %v1147
        %v1180 = vunpack.c.l.b16 %v1148
        %v1181 = vunpack.c.l.b16 %v1149
        %v1182 = vpack.c.b16 %v1167, %v1166
        %v1183 = vpack.c.b16 %v1169, %v1168
        %v1184 = vpack.c.b16 %v1171, %v1170
        %v1185 = vpack.c.b16 %v1173, %v1172
        %v1186 = vpack.c.b16 %v1175, %v1174
        %v1187 = vpack.c.b16 %v1177, %v1176
        %v1188 = vpack.c.b16 %v1179, %v1178
        %v1189 = vpack.c.b16 %v1181, %v1180
        %1198 = vmatpush.bf16.msra.mxu0 %v1189
        %1199 = vmatpush.bf16.msra.mxu0 %v1188
        %1200 = vmatpush.bf16.msra.mxu0 %v1187
        %1201 = vmatpush.bf16.msra.mxu0 %v1186
        %1202 = vmatpush.bf16.msra.mxu0 %v1185
        %1203 = vmatpush.bf16.msra.mxu0 %v1184
        %1204 = vmatpush.bf16.msra.mxu0 %v1183
        %1205 = vmatpush.bf16.msra.mxu0 %v1182
        %1206 = vmatmul.bf16.gmra.mxu0 %v1133
        %v1207 = vpop.f32.mrf.mxu0
        %v1208 = vadd.f32 0.0, %v1207
        %v1209 = vpop.f32.mrf.mxu0
        %1210 = vdwg.mxu0
        %v1211 = vperm.slane %v1208, 0
        %v1292 = vunpack.c.l.b16 %v991
        %v1293 = vunpack.c.l.b16 %v992
        %v1294 = vunpack.c.l.b16 %v993
        %v1295 = vunpack.c.l.b16 %v994
        %v1296 = vunpack.c.l.b16 %v995
        %v1297 = vunpack.c.l.b16 %v996
        %v1298 = vunpack.c.l.b16 %v997
        %v1299 = vunpack.c.l.b16 %v998
        %v1300 = vunpack.c.l.b16 %v999
        %v1301 = vunpack.c.l.b16 %v1000
        %v1302 = vunpack.c.l.b16 %v1001
        %v1303 = vunpack.c.l.b16 %v1002
        %v1304 = vunpack.c.l.b16 %v1003
        %v1305 = vunpack.c.l.b16 %v1004
        %v1306 = vunpack.c.l.b16 %v1005
        %v1307 = vunpack.c.l.b16 %v1006
        %v1308 = vunpack.c.l.b16 %v1007
        %v1309 = vunpack.c.l.b16 %v1008
        %v1310 = vunpack.c.l.b16 %v1009
        %v1311 = vunpack.c.l.b16 %v1010
        %v1312 = vunpack.c.l.b16 %v1011
        %v1313 = vunpack.c.l.b16 %v1012
        %v1314 = vunpack.c.l.b16 %v1013
        %v1315 = vunpack.c.l.b16 %v1014
        %v1316 = vunpack.c.l.b16 %v1015
        %v1317 = vunpack.c.l.b16 %v1016
        %v1318 = vunpack.c.l.b16 %v1017
        %v1319 = vunpack.c.l.b16 %v1018
        %v1320 = vunpack.c.l.b16 %v1019
        %v1321 = vunpack.c.l.b16 %v1020
        %v1322 = vunpack.c.l.b16 %v1021
        %v1323 = vunpack.c.l.b16 %v1022
        %v1324 = vunpack.c.l.b16 %v1023
        %v1325 = vunpack.c.l.b16 %v1024
        %v1326 = vunpack.c.l.b16 %v1025
        %v1327 = vunpack.c.l.b16 %v1026
        %v1328 = vunpack.c.l.b16 %v1027
        %v1329 = vunpack.c.l.b16 %v1028
        %v1330 = vunpack.c.l.b16 %v1029
        %v1331 = vunpack.c.l.b16 %v1030
        %v1332 = vunpack.c.l.b16 %v1031
        %v1333 = vunpack.c.l.b16 %v1032
        %v1334 = vunpack.c.l.b16 %v1033
        %v1335 = vunpack.c.l.b16 %v1034
        %v1336 = vunpack.c.l.b16 %v1035
        %v1337 = vunpack.c.l.b16 %v1036
        %v1338 = vunpack.c.l.b16 %v1037
        %v1339 = vunpack.c.l.b16 %v1038
        %v1340 = vunpack.c.l.b16 %v1039
        %v1341 = vunpack.c.l.b16 %v1040
        %v1342 = vunpack.c.l.b16 %v1041
        %v1343 = vunpack.c.l.b16 %v1042
        %v1344 = vunpack.c.l.b16 %v1043
        %v1345 = vunpack.c.l.b16 %v1044
        %v1346 = vunpack.c.l.b16 %v1045
        %v1347 = vunpack.c.l.b16 %v1046
        %v1348 = vunpack.c.l.b16 %v1047
        %v1349 = vunpack.c.l.b16 %v1048
        %v1350 = vunpack.c.l.b16 %v1049
        %v1351 = vunpack.c.l.b16 %v1050
        %v1352 = vunpack.c.l.b16 %v1051
        %v1353 = vunpack.c.l.b16 %v1052
        %v1354 = vunpack.c.l.b16 %v1053
        %v1355 = vunpack.c.l.b16 %v1054
        %v1356 = vunpack.c.l.b16 %v1055
        %v1357 = vunpack.c.l.b16 %v1056
        %v1358 = vunpack.c.l.b16 %v1057
        %v1359 = vunpack.c.l.b16 %v1058
        %v1360 = vunpack.c.l.b16 %v1059
        %v1361 = vunpack.c.l.b16 %v1060
        %v1362 = vunpack.c.l.b16 %v1061
        %v1363 = vunpack.c.l.b16 %v1062
        %v1364 = vunpack.c.l.b16 %v1063
        %v1365 = vunpack.c.l.b16 %v1064
        %v1366 = vunpack.c.l.b16 %v1065
        %v1367 = vunpack.c.l.b16 %v1066
        %v1368 = vunpack.c.l.b16 %v1067
        %v1369 = vunpack.c.l.b16 %v1068
        %v1370 = vunpack.c.l.b16 %v1069
        %v1371 = vunpack.c.l.b16 %v1070
        %v1372 = vpack.c.b16 %v1293, %v1292
        %v1373 = vpack.c.b16 %v1295, %v1294
        %v1374 = vpack.c.b16 %v1297, %v1296
        %v1375 = vpack.c.b16 %v1299, %v1298
        %v1376 = vpack.c.b16 %v1301, %v1300
        %v1377 = vpack.c.b16 %v1303, %v1302
        %v1378 = vpack.c.b16 %v1305, %v1304
        %v1379 = vpack.c.b16 %v1307, %v1306
        %v1380 = vpack.c.b16 %v1309, %v1308
        %v1381 = vpack.c.b16 %v1311, %v1310
        %v1382 = vpack.c.b16 %v1313, %v1312
        %v1383 = vpack.c.b16 %v1315, %v1314
        %v1384 = vpack.c.b16 %v1317, %v1316
        %v1385 = vpack.c.b16 %v1319, %v1318
        %v1386 = vpack.c.b16 %v1321, %v1320
        %v1387 = vpack.c.b16 %v1323, %v1322
        %v1388 = vpack.c.b16 %v1325, %v1324
        %v1389 = vpack.c.b16 %v1327, %v1326
        %v1390 = vpack.c.b16 %v1329, %v1328
        %v1391 = vpack.c.b16 %v1331, %v1330
        %v1392 = vpack.c.b16 %v1333, %v1332
        %v1393 = vpack.c.b16 %v1335, %v1334
        %v1394 = vpack.c.b16 %v1337, %v1336
        %v1395 = vpack.c.b16 %v1339, %v1338
        %v1396 = vpack.c.b16 %v1341, %v1340
        %v1397 = vpack.c.b16 %v1343, %v1342
        %v1398 = vpack.c.b16 %v1345, %v1344
        %v1399 = vpack.c.b16 %v1347, %v1346
        %v1400 = vpack.c.b16 %v1349, %v1348
        %v1401 = vpack.c.b16 %v1351, %v1350
        %v1402 = vpack.c.b16 %v1353, %v1352
        %v1403 = vpack.c.b16 %v1355, %v1354
        %v1404 = vpack.c.b16 %v1357, %v1356
        %v1405 = vpack.c.b16 %v1359, %v1358
        %v1406 = vpack.c.b16 %v1361, %v1360
        %v1407 = vpack.c.b16 %v1363, %v1362
        %v1408 = vpack.c.b16 %v1365, %v1364
        %v1409 = vpack.c.b16 %v1367, %v1366
        %v1410 = vpack.c.b16 %v1369, %v1368
        %v1411 = vpack.c.b16 %v1371, %v1370
        %1452 = vmatpush.bf16.msra.mxu0 %v1379
        %1453 = vmatpush.bf16.msra.mxu0 %v1378
        %1454 = vmatpush.bf16.msra.mxu0 %v1377
        %1455 = vmatpush.bf16.msra.mxu0 %v1376
        %1456 = vmatpush.bf16.msra.mxu0 %v1375
        %1457 = vmatpush.bf16.msra.mxu0 %v1374
        %1458 = vmatpush.bf16.msra.mxu0 %v1373
        %1459 = vmatpush.bf16.msra.mxu0 %v1372
        %1460 = vmatmul.bf16.gmra.mxu0 %v965
        %v1461 = vpop.f32.mrf.mxu0
        %v1462 = vadd.f32 %v1211, %v1461
        %v1463 = vpop.f32.mrf.mxu0
        %v1464 = vadd.f32 %v1211, %v1463
        %1465 = vdwg.mxu0
        %1466 = vmatpush.bf16.msra.mxu0 %v1387
        %1467 = vmatpush.bf16.msra.mxu0 %v1386
        %1468 = vmatpush.bf16.msra.mxu0 %v1385
        %1469 = vmatpush.bf16.msra.mxu0 %v1384
        %1470 = vmatpush.bf16.msra.mxu0 %v1383
        %1471 = vmatpush.bf16.msra.mxu0 %v1382
        %1472 = vmatpush.bf16.msra.mxu0 %v1381
        %1473 = vmatpush.bf16.msra.mxu0 %v1380
        %1474 = vmatmul.bf16.gmra.mxu0 %v971
        %v1475 = vpop.f32.mrf.mxu0
        %v1476 = vadd.f32 %v1462, %v1475
        %v1477 = vpop.f32.mrf.mxu0
        %v1478 = vadd.f32 %v1464, %v1477
        %1479 = vdwg.mxu0
        %1480 = vmatpush.bf16.msra.mxu0 %v1395
        %1481 = vmatpush.bf16.msra.mxu0 %v1394
        %1482 = vmatpush.bf16.msra.mxu0 %v1393
        %1483 = vmatpush.bf16.msra.mxu0 %v1392
        %1484 = vmatpush.bf16.msra.mxu0 %v1391
        %1485 = vmatpush.bf16.msra.mxu0 %v1390
        %1486 = vmatpush.bf16.msra.mxu0 %v1389
        %1487 = vmatpush.bf16.msra.mxu0 %v1388
        %1488 = vmatmul.bf16.gmra.mxu0 %v977
        %v1489 = vpop.f32.mrf.mxu0
        %v1490 = vadd.f32 %v1476, %v1489
        %v1491 = vpop.f32.mrf.mxu0
        %v1492 = vadd.f32 %v1478, %v1491
        %1493 = vdwg.mxu0
        %1494 = vmatpush.bf16.msra.mxu0 %v1403
        %1495 = vmatpush.bf16.msra.mxu0 %v1402
        %1496 = vmatpush.bf16.msra.mxu0 %v1401
        %1497 = vmatpush.bf16.msra.mxu0 %v1400
        %1498 = vmatpush.bf16.msra.mxu0 %v1399
        %1499 = vmatpush.bf16.msra.mxu0 %v1398
        %1500 = vmatpush.bf16.msra.mxu0 %v1397
        %1501 = vmatpush.bf16.msra.mxu0 %v1396
        %1502 = vmatmul.bf16.gmra.mxu0 %v983
        %v1503 = vpop.f32.mrf.mxu0
        %v1504 = vadd.f32 %v1490, %v1503
        %v1505 = vpop.f32.mrf.mxu0
        %v1506 = vadd.f32 %v1492, %v1505
        %1507 = vdwg.mxu0
        %1508 = vmatpush.bf16.msra.mxu0 %v1411
        %1509 = vmatpush.bf16.msra.mxu0 %v1410
        %1510 = vmatpush.bf16.msra.mxu0 %v1409
        %1511 = vmatpush.bf16.msra.mxu0 %v1408
        %1512 = vmatpush.bf16.msra.mxu0 %v1407
        %1513 = vmatpush.bf16.msra.mxu0 %v1406
        %1514 = vmatpush.bf16.msra.mxu0 %v1405
        %1515 = vmatpush.bf16.msra.mxu0 %v1404
        %1516 = vmatmul.bf16.gmra.mxu0 %v989
        %v1517 = vpop.f32.mrf.mxu0
        %v1518 = vadd.f32 %v1504, %v1517
        %v1519 = vpop.f32.mrf.mxu0
        %v1520 = vadd.f32 %v1506, %v1519
        %1521 = vdwg.mxu0
        %v1522 = vld [vmem:[%s8] sm:$0x1]
        %v1524 = vperm.slane %v1522, 0
        %v1526 = vadd.f32 %v1518, %v1524
        %v1527 = vadd.f32 %v1520, %v1524
        %v1528 = vmax.f32 %v1526, 0.0
        %v1529 = vmax.f32 %v1527, 0.0
        %1530 = vst [vmem:[%s449] sm:$0xff] %v1528
        %1531 = vst [vmem:[%s449 + $0x8] sm:$0xff] %v1529
        %s1532 = sand.u32 %s231, 1
        %s1533 = scalar_lea.sflag [#allocation5], %s1532
        %s1534 = sand.u32 %s231, 1
        %s1535 = smul.addr %s1534, 16
        %s1536 = scalar_lea.vmem [#allocation15], %s1535
        // Predicated region
        $region85: #{tpu_custom_call.1} parent=55 // pred_check
          %p1537 = pneg %p241
        $region86: #{tpu_custom_call.1} parent=55 // pred_check_branch
          %1539 = sbr.rel (%p1537) target = $region88
        $region87: #{tpu_custom_call.1} parent=55 // pred_region
          %1541 = vsyncadd %s1533, 0
          %s1542 = smul.addr %s29, 2
          %s1543 = smul.addr %s1542, 8
          %s1544 = scalar_lea.hbm %s9, %s1543
          %s1545 = sshll.u32 %s1536, 4
          %s1546 = int_to_ptr.vmem [resolvable:$true] %s1545
          %s1547 = sshll.u32 %s1544, 4
          %s1548 = int_to_ptr.hbm [resolvable:$true] %s1547
          %1553 = dma.vmem_to_hbm [thread:$0]  %s1546, 256, %s1548, %s1533, 128, 128, 8
        $region88: #{tpu_custom_call.1} parent=55 // pred_fallthru
          _
      $region56: #{tpu_custom_call.1} parent=5 // pred_fallthru
        _
      %p1554 = scmp.le.s32.totalorder 2, %s24
      // Predicated region
      $region89: #{tpu_custom_call.1} parent=5 // pred_check
        %p1555 = pneg %p1554
      $region90: #{tpu_custom_call.1} parent=5 // pred_check_branch
        %1557 = sbr.rel (%p1555) target = $region92
      $region91: #{tpu_custom_call.1} parent=5 // pred_region
        %s1558 = ssub.s32 %s24, 2
        // Predicated region
        $region93: #{tpu_custom_call.1} parent=91 // pred_check
          %p1559 = pneg %p247
        $region94: #{tpu_custom_call.1} parent=91 // pred_check_branch
          %1561 = sbr.rel (%p1559) target = $region96
        $region95: #{tpu_custom_call.1} parent=91 // pred_region
          %s1562 = sand.u32 %s232, 1
          %s1563 = scalar_lea.sflag [#allocation5], %s1562
          %s1564 = sand.u32 %s232, 1
          %s1565 = smul.addr %s1564, 16
          %s1566 = scalar_lea.vmem [#allocation15], %s1565
          %1568 = dma.done %s1563, 256
        $region96: #{tpu_custom_call.1} parent=91 // pred_fallthru
          _
      $region92: #{tpu_custom_call.1} parent=5 // pred_fallthru
        _
    $region6: #{tpu_custom_call.1} parent=1 // loop_footer
      %s28 = sadd.s32 1, %s24
    $region7: #{tpu_custom_call.1} parent=1 // loop_footer_branch
      %23 = sbr.rel target = $region3
    $region8: #{tpu_custom_call.1} parent=1 // loop_exit
      _
    %1569 = vsyncpa [#allocation4], 1
    %s1570 = scalar_lea.sflag [#allocation4], 1
    %1571 = vsyncpa %s1570, 1
    %1572 = vsyncpa [#allocation7], 1
    %1573 = vsyncpa [#allocation10], 1
    %1574 = vsyncpa [#allocation13], 1
    %1575 = vsyncpa [#allocation5], 1
    %s1576 = scalar_lea.sflag [#allocation5], 1
    %1577 = vsyncpa %s1576, 1

</llo_original>
